<compile_context>
chip_gen: v6e
topology: v6e:2x2x1
jax: 0.10.0
libtpu: 0.0.40
codegen_flags: <defaults>
</compile_context>

<pallas_src>
import functools

import jax
import jax.numpy as jnp
from jax.experimental import pallas as pl
from jax.experimental.pallas import tpu as pltpu


# ----------------------------- Pallas kernel --------------------------------

def _prenorm_cross_attn_kernel(xq_ref, ctx_ref, g_ref, b_ref,
                               wq_ref, wkv_ref, wo_ref, bo_ref,
                               o_ref, *, batch, nq, nk, heads, dim_head,
                               scale, eps):
    # xq_ref : (B*Nq, dim)   ctx_ref : (B*Nk, dim)
    # g/b/bo : (1, dim)      wq: (dim, inner)  wkv: (dim, 2*inner)  wo: (inner, dim)
    dim = xq_ref.shape[-1]
    inner = wq_ref.shape[-1]

    # --- PreNorm: LayerNorm over the last dim (query only), stats in f32 ---
    x = xq_ref[...].astype(jnp.float32)                    # (B*Nq, dim)
    s1 = jnp.sum(x, axis=-1, keepdims=True)                # one-pass stats
    s2 = jnp.sum(x * x, axis=-1, keepdims=True)
    mean = s1 * (1.0 / dim)
    var = s2 * (1.0 / dim) - mean * mean
    xn = (x - mean) * jax.lax.rsqrt(var + eps)
    xn = xn * g_ref[...] + b_ref[...]                      # (B*Nq, dim)

    # --- CrossAttention projections (scale folded into q) ---
    q = jnp.dot(xn, wq_ref[...],
                preferred_element_type=jnp.float32) * scale        # (B*Nq, inner)
    kv = jnp.dot(ctx_ref[...], wkv_ref[...],
                 preferred_element_type=jnp.float32)               # (B*Nk, 2*inner)
    k = kv[:, :inner]
    v = kv[:, inner:]

    # --- Scores: NT dot_general (no explicit transpose), one batched softmax
    dn = (((1,), (1,)), ((), ()))                          # contract last dims
    sims = []
    for b in range(batch):
        qb = q[b * nq:(b + 1) * nq, :]
        kb = k[b * nk:(b + 1) * nk, :]
        for h in range(heads):
            lo = h * dim_head
            hi = lo + dim_head
            sims.append(jax.lax.dot_general(
                qb[:, lo:hi], kb[:, lo:hi], dn,
                preferred_element_type=jnp.float32))       # (Nq, Nk)
    s = jnp.stack(sims, axis=0)                            # (B*H, Nq, Nk)
    s = s - jnp.max(s, axis=-1, keepdims=True)
    p = jnp.exp(s)
    attn = p / jnp.sum(p, axis=-1, keepdims=True)          # exact reciprocal

    # --- attn @ v, lane-concat heads + batches, ONE output projection ---
    o_slabs = []
    for b in range(batch):
        vb = v[b * nk:(b + 1) * nk, :]
        head_outs = []
        for h in range(heads):
            lo = h * dim_head
            hi = lo + dim_head
            head_outs.append(jnp.dot(attn[b * heads + h], vb[:, lo:hi],
                                     preferred_element_type=jnp.float32))
        o_slabs.append(jnp.concatenate(head_outs, axis=-1))        # (Nq, inner)
    o_all = jnp.concatenate(o_slabs, axis=0)                       # (B*Nq, inner)
    y = jnp.dot(o_all, wo_ref[...],
                preferred_element_type=jnp.float32) + bo_ref[...]  # (B*Nq, dim)
    o_ref[...] = y.astype(o_ref.dtype)                             # single dense store


# ----------------------------- Wrapper ---------------------------------------

def prenorm_cross_attention(x, context, params, *, heads, eps=1e-5):
    """PreNorm(dim, CrossAttention).forward(x, key=context, value=context).

    x: (B, Nq, dim), context: (B, Nk, dim) -> (B, Nq, dim).
    """
    B, Nq, dim = x.shape
    Nk = context.shape[1]
    inner = params["wq"].shape[1]
    dim_head = inner // heads
    scale = dim_head ** -0.5

    # Fold the batch into the row (sublane) axis: single grid step, denser tiles.
    x2 = x.reshape(B * Nq, dim)
    ctx2 = context.reshape(B * Nk, dim)
    # Fuse the K and V projection weights (key == value == context).
    wkv = jnp.concatenate([params["wk"], params["wv"]], axis=1)    # (dim, 2*inner)

    kern = functools.partial(_prenorm_cross_attn_kernel,
                             batch=B, nq=Nq, nk=Nk, heads=heads,
                             dim_head=dim_head, scale=scale, eps=eps)

    vmem = pl.BlockSpec(memory_space=pltpu.MemorySpace.VMEM)
    out2 = pl.pallas_call(
        kern,
        out_shape=jax.ShapeDtypeStruct((B * Nq, dim), x.dtype),
        in_specs=[vmem] * 8,
        out_specs=vmem,
    )(x2, ctx2,
      params["gamma"].reshape(1, dim), params["beta"].reshape(1, dim),
      params["wq"], wkv, params["wo"], params["bo"].reshape(1, dim))
    return out2.reshape(B, Nq, dim)


# ----------------------------- Reference (pure JAX) --------------------------

def prenorm_cross_attention_ref(x, context, params, *, heads, eps=1e-5):
    B, Nq, dim = x.shape
    Nk = context.shape[1]
    inner = params["wq"].shape[1]
    dh = inner // heads
    scale = dh ** -0.5

    mean = jnp.mean(x, axis=-1, keepdims=True)
    var = jnp.mean((x - mean) ** 2, axis=-1, keepdims=True)
    xn = (x - mean) * jax.lax.rsqrt(var + eps) * params["gamma"] + params["beta"]

    q = xn @ params["wq"]
    k = context @ params["wk"]
    v = context @ params["wv"]
    sh = lambda t, n: t.reshape(B, n, heads, dh).transpose(0, 2, 1, 3)
    qh, kh, vh = sh(q, Nq), sh(k, Nk), sh(v, Nk)
    sim = jnp.einsum("bhid,bhjd->bhij", qh, kh) * scale
    attn = jax.nn.softmax(sim, axis=-1)
    o = jnp.einsum("bhij,bhjd->bhid", attn, vh)
    o = o.transpose(0, 2, 1, 3).reshape(B, Nq, inner)
    return o @ params["wo"] + params["bo"]


# ----------------------------- Main ------------------------------------------

if __name__ == "__main__":
    # Small shapes consistent with the module's forward.
    batch, seq_q, seq_kv = 2, 8, 8
    dim, heads, dim_head = 32, 4, 8
    inner_dim = heads * dim_head

    key0 = jax.random.PRNGKey(0)
    (k_x, k_c, k_wq, k_wk, k_wv, k_wo, k_bo, k_g, k_b) = jax.random.split(key0, 9)

    x   = jax.random.normal(k_x, (batch, seq_q, dim), dtype=jnp.float32)
    ctx = jax.random.normal(k_c, (batch, seq_kv, dim), dtype=jnp.float32)

    # Deterministic synthetic parameters.  PyTorch Linear stores W as (out, in)
    # and computes x @ W^T; we store the transposed (in, out) form.  LayerNorm
    # weight/bias perturbed from their (1, 0) init to exercise them.
    params = {
        "gamma": 1.0 + 0.1 * jax.random.normal(k_g, (dim,), dtype=jnp.float32),
        "beta":  0.05 * jax.random.normal(k_b, (dim,), dtype=jnp.float32),
        "wq": 0.1 * jax.random.normal(k_wq, (dim, inner_dim), dtype=jnp.float32),
        "wk": 0.1 * jax.random.normal(k_wk, (dim, inner_dim), dtype=jnp.float32),
        "wv": 0.1 * jax.random.normal(k_wv, (dim, inner_dim), dtype=jnp.float32),
        "wo": 0.1 * jax.random.normal(k_wo, (inner_dim, dim), dtype=jnp.float32),
        "bo": 0.01 * jax.random.normal(k_bo, (dim,), dtype=jnp.float32),
    }

    out = prenorm_cross_attention(x, ctx, params, heads=heads)
    out = jax.block_until_ready(out)

    ref = prenorm_cross_attention_ref(x, ctx, params, heads=heads)
    assert out.shape == (batch, seq_q, dim)
    assert jnp.allclose(out, ref, atol=1e-3, rtol=1e-3), "mismatch vs. reference"

    print("KERNEL_OK")
</pallas_src>

<mosaic_0001>
module attributes {stable_mosaic.version = 11 : i64} {
  func.func @_prenorm_cross_attn_kernel(%arg0: memref<16x32xf32, #tpu.memory_space<vmem>>, %arg1: memref<16x32xf32, #tpu.memory_space<vmem>>, %arg2: memref<1x32xf32, #tpu.memory_space<vmem>>, %arg3: memref<1x32xf32, #tpu.memory_space<vmem>>, %arg4: memref<32x32xf32, #tpu.memory_space<vmem>>, %arg5: memref<32x64xf32, #tpu.memory_space<vmem>>, %arg6: memref<32x32xf32, #tpu.memory_space<vmem>>, %arg7: memref<1x32xf32, #tpu.memory_space<vmem>>, %arg8: memref<16x32xf32, #tpu.memory_space<vmem>>) attributes {dimension_semantics = [], scalar_prefetch = 0 : i64, scratch_operands = 0 : i64, tpu.core_type = #tpu.core_type<tc>} {
    %c0 = arith.constant 0 : index
    %c0_0 = arith.constant 0 : index
    %0 = vector.load %arg0[%c0, %c0_0] : memref<16x32xf32, #tpu.memory_space<vmem>>, vector<16x32xf32>
    %cst = arith.constant dense<0.000000e+00> : vector<16xf32>
    %1 = vector.multi_reduction <add>, %0, %cst [1] : vector<16x32xf32> to vector<16xf32>
    %2 = vector.shape_cast %1 : vector<16xf32> to vector<16x1xf32>
    %3 = arith.mulf %0, %0 : vector<16x32xf32>
    %cst_1 = arith.constant dense<0.000000e+00> : vector<16xf32>
    %4 = vector.multi_reduction <add>, %3, %cst_1 [1] : vector<16x32xf32> to vector<16xf32>
    %5 = vector.shape_cast %4 : vector<16xf32> to vector<16x1xf32>
    %cst_2 = arith.constant 3.125000e-02 : f32
    %6 = vector.broadcast %cst_2 : f32 to vector<16x1xf32>
    %7 = arith.mulf %2, %6 : vector<16x1xf32>
    %cst_3 = arith.constant 3.125000e-02 : f32
    %8 = vector.broadcast %cst_3 : f32 to vector<16x1xf32>
    %9 = arith.mulf %5, %8 : vector<16x1xf32>
    %10 = arith.mulf %7, %7 : vector<16x1xf32>
    %11 = arith.subf %9, %10 : vector<16x1xf32>
    %12 = vector.broadcast %7 : vector<16x1xf32> to vector<16x32xf32>
    %13 = arith.subf %0, %12 : vector<16x32xf32>
    %cst_4 = arith.constant 9.99999974E-6 : f32
    %14 = vector.broadcast %cst_4 : f32 to vector<16x1xf32>
    %15 = arith.addf %11, %14 : vector<16x1xf32>
    %16 = math.rsqrt %15 : vector<16x1xf32>
    %17 = vector.broadcast %16 : vector<16x1xf32> to vector<16x32xf32>
    %18 = arith.mulf %13, %17 : vector<16x32xf32>
    %c0_5 = arith.constant 0 : index
    %c0_6 = arith.constant 0 : index
    %19 = vector.load %arg2[%c0_5, %c0_6] : memref<1x32xf32, #tpu.memory_space<vmem>>, vector<1x32xf32>
    %20 = vector.broadcast %19 : vector<1x32xf32> to vector<16x32xf32>
    %21 = arith.mulf %18, %20 : vector<16x32xf32>
    %c0_7 = arith.constant 0 : index
    %c0_8 = arith.constant 0 : index
    %22 = vector.load %arg3[%c0_7, %c0_8] : memref<1x32xf32, #tpu.memory_space<vmem>>, vector<1x32xf32>
    %23 = vector.broadcast %22 : vector<1x32xf32> to vector<16x32xf32>
    %24 = arith.addf %21, %23 : vector<16x32xf32>
    %c0_9 = arith.constant 0 : index
    %c0_10 = arith.constant 0 : index
    %25 = vector.load %arg4[%c0_9, %c0_10] : memref<32x32xf32, #tpu.memory_space<vmem>>, vector<32x32xf32>
    %cst_11 = arith.constant dense<0.000000e+00> : vector<16x32xf32>
    %26 = tpu.matmul %24, %25, %cst_11 {dimension_numbers = #tpu.dot_dimension_numbers<[1], [0], [0], [1], [0, 0, 1, 1], [], []>} : vector<16x32xf32>, vector<32x32xf32>, vector<16x32xf32> -> vector<16x32xf32>
    %cst_12 = arith.constant 0.353553385 : f32
    %27 = vector.broadcast %cst_12 : f32 to vector<16x32xf32>
    %28 = arith.mulf %26, %27 : vector<16x32xf32>
    %c0_13 = arith.constant 0 : index
    %c0_14 = arith.constant 0 : index
    %29 = vector.load %arg1[%c0_13, %c0_14] : memref<16x32xf32, #tpu.memory_space<vmem>>, vector<16x32xf32>
    %c0_15 = arith.constant 0 : index
    %c0_16 = arith.constant 0 : index
    %30 = vector.load %arg5[%c0_15, %c0_16] : memref<32x64xf32, #tpu.memory_space<vmem>>, vector<32x64xf32>
    %cst_17 = arith.constant dense<0.000000e+00> : vector<16x64xf32>
    %31 = tpu.matmul %29, %30, %cst_17 {dimension_numbers = #tpu.dot_dimension_numbers<[1], [0], [0], [1], [0, 0, 1, 1], [], []>} : vector<16x32xf32>, vector<32x64xf32>, vector<16x64xf32> -> vector<16x64xf32>
    %32 = vector.extract_strided_slice %31 {offsets = [0, 0], sizes = [16, 32], strides = [1, 1]} : vector<16x64xf32> to vector<16x32xf32>
    %33 = vector.extract_strided_slice %31 {offsets = [0, 32], sizes = [16, 32], strides = [1, 1]} : vector<16x64xf32> to vector<16x32xf32>
    %34 = vector.extract_strided_slice %28 {offsets = [0, 0], sizes = [8, 32], strides = [1, 1]} : vector<16x32xf32> to vector<8x32xf32>
    %35 = vector.extract_strided_slice %32 {offsets = [0, 0], sizes = [8, 32], strides = [1, 1]} : vector<16x32xf32> to vector<8x32xf32>
    %36 = vector.extract_strided_slice %34 {offsets = [0, 0], sizes = [8, 8], strides = [1, 1]} : vector<8x32xf32> to vector<8x8xf32>
    %37 = vector.extract_strided_slice %35 {offsets = [0, 0], sizes = [8, 8], strides = [1, 1]} : vector<8x32xf32> to vector<8x8xf32>
    %cst_18 = arith.constant dense<0.000000e+00> : vector<8x8xf32>
    %38 = tpu.matmul %36, %37, %cst_18 {dimension_numbers = #tpu.dot_dimension_numbers<[1], [1], [0], [0], [0, 0, 1, 0], [], []>} : vector<8x8xf32>, vector<8x8xf32>, vector<8x8xf32> -> vector<8x8xf32>
    %39 = vector.extract_strided_slice %34 {offsets = [0, 8], sizes = [8, 8], strides = [1, 1]} : vector<8x32xf32> to vector<8x8xf32>
    %40 = vector.extract_strided_slice %35 {offsets = [0, 8], sizes = [8, 8], strides = [1, 1]} : vector<8x32xf32> to vector<8x8xf32>
    %cst_19 = arith.constant dense<0.000000e+00> : vector<8x8xf32>
    %41 = tpu.matmul %39, %40, %cst_19 {dimension_numbers = #tpu.dot_dimension_numbers<[1], [1], [0], [0], [0, 0, 1, 0], [], []>} : vector<8x8xf32>, vector<8x8xf32>, vector<8x8xf32> -> vector<8x8xf32>
    %42 = vector.extract_strided_slice %34 {offsets = [0, 16], sizes = [8, 8], strides = [1, 1]} : vector<8x32xf32> to vector<8x8xf32>
    %43 = vector.extract_strided_slice %35 {offsets = [0, 16], sizes = [8, 8], strides = [1, 1]} : vector<8x32xf32> to vector<8x8xf32>
    %cst_20 = arith.constant dense<0.000000e+00> : vector<8x8xf32>
    %44 = tpu.matmul %42, %43, %cst_20 {dimension_numbers = #tpu.dot_dimension_numbers<[1], [1], [0], [0], [0, 0, 1, 0], [], []>} : vector<8x8xf32>, vector<8x8xf32>, vector<8x8xf32> -> vector<8x8xf32>
    %45 = vector.extract_strided_slice %34 {offsets = [0, 24], sizes = [8, 8], strides = [1, 1]} : vector<8x32xf32> to vector<8x8xf32>
    %46 = vector.extract_strided_slice %35 {offsets = [0, 24], sizes = [8, 8], strides = [1, 1]} : vector<8x32xf32> to vector<8x8xf32>
    %cst_21 = arith.constant dense<0.000000e+00> : vector<8x8xf32>
    %47 = tpu.matmul %45, %46, %cst_21 {dimension_numbers = #tpu.dot_dimension_numbers<[1], [1], [0], [0], [0, 0, 1, 0], [], []>} : vector<8x8xf32>, vector<8x8xf32>, vector<8x8xf32> -> vector<8x8xf32>
    %48 = vector.extract_strided_slice %28 {offsets = [8, 0], sizes = [8, 32], strides = [1, 1]} : vector<16x32xf32> to vector<8x32xf32>
    %49 = vector.extract_strided_slice %32 {offsets = [8, 0], sizes = [8, 32], strides = [1, 1]} : vector<16x32xf32> to vector<8x32xf32>
    %50 = vector.extract_strided_slice %48 {offsets = [0, 0], sizes = [8, 8], strides = [1, 1]} : vector<8x32xf32> to vector<8x8xf32>
    %51 = vector.extract_strided_slice %49 {offsets = [0, 0], sizes = [8, 8], strides = [1, 1]} : vector<8x32xf32> to vector<8x8xf32>
    %cst_22 = arith.constant dense<0.000000e+00> : vector<8x8xf32>
    %52 = tpu.matmul %50, %51, %cst_22 {dimension_numbers = #tpu.dot_dimension_numbers<[1], [1], [0], [0], [0, 0, 1, 0], [], []>} : vector<8x8xf32>, vector<8x8xf32>, vector<8x8xf32> -> vector<8x8xf32>
    %53 = vector.extract_strided_slice %48 {offsets = [0, 8], sizes = [8, 8], strides = [1, 1]} : vector<8x32xf32> to vector<8x8xf32>
    %54 = vector.extract_strided_slice %49 {offsets = [0, 8], sizes = [8, 8], strides = [1, 1]} : vector<8x32xf32> to vector<8x8xf32>
    %cst_23 = arith.constant dense<0.000000e+00> : vector<8x8xf32>
    %55 = tpu.matmul %53, %54, %cst_23 {dimension_numbers = #tpu.dot_dimension_numbers<[1], [1], [0], [0], [0, 0, 1, 0], [], []>} : vector<8x8xf32>, vector<8x8xf32>, vector<8x8xf32> -> vector<8x8xf32>
    %56 = vector.extract_strided_slice %48 {offsets = [0, 16], sizes = [8, 8], strides = [1, 1]} : vector<8x32xf32> to vector<8x8xf32>
    %57 = vector.extract_strided_slice %49 {offsets = [0, 16], sizes = [8, 8], strides = [1, 1]} : vector<8x32xf32> to vector<8x8xf32>
    %cst_24 = arith.constant dense<0.000000e+00> : vector<8x8xf32>
    %58 = tpu.matmul %56, %57, %cst_24 {dimension_numbers = #tpu.dot_dimension_numbers<[1], [1], [0], [0], [0, 0, 1, 0], [], []>} : vector<8x8xf32>, vector<8x8xf32>, vector<8x8xf32> -> vector<8x8xf32>
    %59 = vector.extract_strided_slice %48 {offsets = [0, 24], sizes = [8, 8], strides = [1, 1]} : vector<8x32xf32> to vector<8x8xf32>
    %60 = vector.extract_strided_slice %49 {offsets = [0, 24], sizes = [8, 8], strides = [1, 1]} : vector<8x32xf32> to vector<8x8xf32>
    %cst_25 = arith.constant dense<0.000000e+00> : vector<8x8xf32>
    %61 = tpu.matmul %59, %60, %cst_25 {dimension_numbers = #tpu.dot_dimension_numbers<[1], [1], [0], [0], [0, 0, 1, 0], [], []>} : vector<8x8xf32>, vector<8x8xf32>, vector<8x8xf32> -> vector<8x8xf32>
    %62 = vector.shape_cast %38 : vector<8x8xf32> to vector<1x8x8xf32>
    %63 = vector.shape_cast %41 : vector<8x8xf32> to vector<1x8x8xf32>
    %64 = vector.shape_cast %44 : vector<8x8xf32> to vector<1x8x8xf32>
    %65 = vector.shape_cast %47 : vector<8x8xf32> to vector<1x8x8xf32>
    %66 = vector.shape_cast %52 : vector<8x8xf32> to vector<1x8x8xf32>
    %67 = vector.shape_cast %55 : vector<8x8xf32> to vector<1x8x8xf32>
    %68 = vector.shape_cast %58 : vector<8x8xf32> to vector<1x8x8xf32>
    %69 = vector.shape_cast %61 : vector<8x8xf32> to vector<1x8x8xf32>
    %70 = tpu.concatenate %62, %63, %64, %65, %66, %67, %68, %69 in 0 : vector<1x8x8xf32>, vector<1x8x8xf32>, vector<1x8x8xf32>, vector<1x8x8xf32>, vector<1x8x8xf32>, vector<1x8x8xf32>, vector<1x8x8xf32>, vector<1x8x8xf32> -> vector<8x8x8xf32>
    %cst_26 = arith.constant dense<0xFF800000> : vector<8x8xf32>
    %71 = vector.multi_reduction <maximumf>, %70, %cst_26 [2] : vector<8x8x8xf32> to vector<8x8xf32>
    %72 = vector.shape_cast %71 : vector<8x8xf32> to vector<8x8x1xf32>
    %73 = vector.broadcast %72 : vector<8x8x1xf32> to vector<8x8x8xf32>
    %74 = arith.subf %70, %73 : vector<8x8x8xf32>
    %75 = math.exp %74 : vector<8x8x8xf32>
    %cst_27 = arith.constant dense<0.000000e+00> : vector<8x8xf32>
    %76 = vector.multi_reduction <add>, %75, %cst_27 [2] : vector<8x8x8xf32> to vector<8x8xf32>
    %77 = vector.shape_cast %76 : vector<8x8xf32> to vector<8x8x1xf32>
    %78 = vector.broadcast %77 : vector<8x8x1xf32> to vector<8x8x8xf32>
    %79 = arith.divf %75, %78 : vector<8x8x8xf32>
    %80 = vector.extract_strided_slice %33 {offsets = [0, 0], sizes = [8, 32], strides = [1, 1]} : vector<16x32xf32> to vector<8x32xf32>
    %81 = vector.extract_strided_slice %79 {offsets = [0, 0, 0], sizes = [1, 8, 8], strides = [1, 1, 1]} : vector<8x8x8xf32> to vector<1x8x8xf32>
    %82 = vector.shape_cast %81 : vector<1x8x8xf32> to vector<8x8xf32>
    %83 = vector.extract_strided_slice %80 {offsets = [0, 0], sizes = [8, 8], strides = [1, 1]} : vector<8x32xf32> to vector<8x8xf32>
    %cst_28 = arith.constant dense<0.000000e+00> : vector<8x8xf32>
    %84 = tpu.matmul %82, %83, %cst_28 {dimension_numbers = #tpu.dot_dimension_numbers<[1], [0], [0], [1], [0, 0, 1, 1], [], []>} : vector<8x8xf32>, vector<8x8xf32>, vector<8x8xf32> -> vector<8x8xf32>
    %85 = vector.extract_strided_slice %79 {offsets = [1, 0, 0], sizes = [1, 8, 8], strides = [1, 1, 1]} : vector<8x8x8xf32> to vector<1x8x8xf32>
    %86 = vector.shape_cast %85 : vector<1x8x8xf32> to vector<8x8xf32>
    %87 = vector.extract_strided_slice %80 {offsets = [0, 8], sizes = [8, 8], strides = [1, 1]} : vector<8x32xf32> to vector<8x8xf32>
    %cst_29 = arith.constant dense<0.000000e+00> : vector<8x8xf32>
    %88 = tpu.matmul %86, %87, %cst_29 {dimension_numbers = #tpu.dot_dimension_numbers<[1], [0], [0], [1], [0, 0, 1, 1], [], []>} : vector<8x8xf32>, vector<8x8xf32>, vector<8x8xf32> -> vector<8x8xf32>
    %89 = vector.extract_strided_slice %79 {offsets = [2, 0, 0], sizes = [1, 8, 8], strides = [1, 1, 1]} : vector<8x8x8xf32> to vector<1x8x8xf32>
    %90 = vector.shape_cast %89 : vector<1x8x8xf32> to vector<8x8xf32>
    %91 = vector.extract_strided_slice %80 {offsets = [0, 16], sizes = [8, 8], strides = [1, 1]} : vector<8x32xf32> to vector<8x8xf32>
    %cst_30 = arith.constant dense<0.000000e+00> : vector<8x8xf32>
    %92 = tpu.matmul %90, %91, %cst_30 {dimension_numbers = #tpu.dot_dimension_numbers<[1], [0], [0], [1], [0, 0, 1, 1], [], []>} : vector<8x8xf32>, vector<8x8xf32>, vector<8x8xf32> -> vector<8x8xf32>
    %93 = vector.extract_strided_slice %79 {offsets = [3, 0, 0], sizes = [1, 8, 8], strides = [1, 1, 1]} : vector<8x8x8xf32> to vector<1x8x8xf32>
    %94 = vector.shape_cast %93 : vector<1x8x8xf32> to vector<8x8xf32>
    %95 = vector.extract_strided_slice %80 {offsets = [0, 24], sizes = [8, 8], strides = [1, 1]} : vector<8x32xf32> to vector<8x8xf32>
    %cst_31 = arith.constant dense<0.000000e+00> : vector<8x8xf32>
    %96 = tpu.matmul %94, %95, %cst_31 {dimension_numbers = #tpu.dot_dimension_numbers<[1], [0], [0], [1], [0, 0, 1, 1], [], []>} : vector<8x8xf32>, vector<8x8xf32>, vector<8x8xf32> -> vector<8x8xf32>
    %97 = tpu.concatenate %84, %88, %92, %96 in 1 : vector<8x8xf32>, vector<8x8xf32>, vector<8x8xf32>, vector<8x8xf32> -> vector<8x32xf32>
    %98 = vector.extract_strided_slice %33 {offsets = [8, 0], sizes = [8, 32], strides = [1, 1]} : vector<16x32xf32> to vector<8x32xf32>
    %99 = vector.extract_strided_slice %79 {offsets = [4, 0, 0], sizes = [1, 8, 8], strides = [1, 1, 1]} : vector<8x8x8xf32> to vector<1x8x8xf32>
    %100 = vector.shape_cast %99 : vector<1x8x8xf32> to vector<8x8xf32>
    %101 = vector.extract_strided_slice %98 {offsets = [0, 0], sizes = [8, 8], strides = [1, 1]} : vector<8x32xf32> to vector<8x8xf32>
    %cst_32 = arith.constant dense<0.000000e+00> : vector<8x8xf32>
    %102 = tpu.matmul %100, %101, %cst_32 {dimension_numbers = #tpu.dot_dimension_numbers<[1], [0], [0], [1], [0, 0, 1, 1], [], []>} : vector<8x8xf32>, vector<8x8xf32>, vector<8x8xf32> -> vector<8x8xf32>
    %103 = vector.extract_strided_slice %79 {offsets = [5, 0, 0], sizes = [1, 8, 8], strides = [1, 1, 1]} : vector<8x8x8xf32> to vector<1x8x8xf32>
    %104 = vector.shape_cast %103 : vector<1x8x8xf32> to vector<8x8xf32>
    %105 = vector.extract_strided_slice %98 {offsets = [0, 8], sizes = [8, 8], strides = [1, 1]} : vector<8x32xf32> to vector<8x8xf32>
    %cst_33 = arith.constant dense<0.000000e+00> : vector<8x8xf32>
    %106 = tpu.matmul %104, %105, %cst_33 {dimension_numbers = #tpu.dot_dimension_numbers<[1], [0], [0], [1], [0, 0, 1, 1], [], []>} : vector<8x8xf32>, vector<8x8xf32>, vector<8x8xf32> -> vector<8x8xf32>
    %107 = vector.extract_strided_slice %79 {offsets = [6, 0, 0], sizes = [1, 8, 8], strides = [1, 1, 1]} : vector<8x8x8xf32> to vector<1x8x8xf32>
    %108 = vector.shape_cast %107 : vector<1x8x8xf32> to vector<8x8xf32>
    %109 = vector.extract_strided_slice %98 {offsets = [0, 16], sizes = [8, 8], strides = [1, 1]} : vector<8x32xf32> to vector<8x8xf32>
    %cst_34 = arith.constant dense<0.000000e+00> : vector<8x8xf32>
    %110 = tpu.matmul %108, %109, %cst_34 {dimension_numbers = #tpu.dot_dimension_numbers<[1], [0], [0], [1], [0, 0, 1, 1], [], []>} : vector<8x8xf32>, vector<8x8xf32>, vector<8x8xf32> -> vector<8x8xf32>
    %111 = vector.extract_strided_slice %79 {offsets = [7, 0, 0], sizes = [1, 8, 8], strides = [1, 1, 1]} : vector<8x8x8xf32> to vector<1x8x8xf32>
    %112 = vector.shape_cast %111 : vector<1x8x8xf32> to vector<8x8xf32>
    %113 = vector.extract_strided_slice %98 {offsets = [0, 24], sizes = [8, 8], strides = [1, 1]} : vector<8x32xf32> to vector<8x8xf32>
    %cst_35 = arith.constant dense<0.000000e+00> : vector<8x8xf32>
    %114 = tpu.matmul %112, %113, %cst_35 {dimension_numbers = #tpu.dot_dimension_numbers<[1], [0], [0], [1], [0, 0, 1, 1], [], []>} : vector<8x8xf32>, vector<8x8xf32>, vector<8x8xf32> -> vector<8x8xf32>
    %115 = tpu.concatenate %102, %106, %110, %114 in 1 : vector<8x8xf32>, vector<8x8xf32>, vector<8x8xf32>, vector<8x8xf32> -> vector<8x32xf32>
    %116 = tpu.concatenate %97, %115 in 0 : vector<8x32xf32>, vector<8x32xf32> -> vector<16x32xf32>
    %c0_36 = arith.constant 0 : index
    %c0_37 = arith.constant 0 : index
    %117 = vector.load %arg6[%c0_36, %c0_37] : memref<32x32xf32, #tpu.memory_space<vmem>>, vector<32x32xf32>
    %cst_38 = arith.constant dense<0.000000e+00> : vector<16x32xf32>
    %118 = tpu.matmul %116, %117, %cst_38 {dimension_numbers = #tpu.dot_dimension_numbers<[1], [0], [0], [1], [0, 0, 1, 1], [], []>} : vector<16x32xf32>, vector<32x32xf32>, vector<16x32xf32> -> vector<16x32xf32>
    %c0_39 = arith.constant 0 : index
    %c0_40 = arith.constant 0 : index
    %119 = vector.load %arg7[%c0_39, %c0_40] : memref<1x32xf32, #tpu.memory_space<vmem>>, vector<1x32xf32>
    %120 = vector.broadcast %119 : vector<1x32xf32> to vector<16x32xf32>
    %121 = arith.addf %118, %120 : vector<16x32xf32>
    %c0_41 = arith.constant 0 : index
    %c0_42 = arith.constant 0 : index
    %122 = vector.load %arg8[%c0_41, %c0_42] : memref<16x32xf32, #tpu.memory_space<vmem>>, vector<16x32xf32>
    tpu.vector_store %arg8[%c0_41, %c0_42], %121 {strides = array<i32>} : memref<16x32xf32, #tpu.memory_space<vmem>>, vector<16x32xf32>,
    return
  }
}

</mosaic_0001>

<llo_original>
// kernel: tpu_custom_call.1
$region0: #{tpu_custom_call.1}
  #allocation0 [shape = 'u32[]', space=smem, size = 0x4, offset = 0x4, fixed_abs, tag = 'smem constant byte address 0x4 - core index']
  #allocation1 [shape = 'u32[144,128]{1,0:T(1,128)}', space=vmem, size = 0x12000, scoped, tag = 'internal scratch']
  %s0 = inlined_call_operand.hbm [shape: f32[16,32], index: 0, kind: input, shape index: {}]
  %s1 = inlined_call_operand.hbm [shape: f32[16,32], index: 1, kind: input, shape index: {}]
  %s2 = inlined_call_operand.vmem [shape: f32[1,32], index: 2, kind: input, shape index: {}]
  %s3 = inlined_call_operand.vmem [shape: f32[1,32], index: 3, kind: input, shape index: {}]
  %s4 = inlined_call_operand.hbm [shape: f32[32,32], index: 4, kind: input, shape index: {}]
  %s5 = inlined_call_operand.hbm [shape: f32[32,64], index: 5, kind: input, shape index: {}]
  %s6 = inlined_call_operand.hbm [shape: f32[32,32], index: 6, kind: input, shape index: {}]
  %s7 = inlined_call_operand.vmem [shape: f32[1,32], index: 7, kind: input, shape index: {}]
  %s8 = inlined_call_operand.hbm [shape: f32[16,32], index: 8, kind: output, shape index: {}]
  %s9 = sld [smem:[#allocation0]]
  $region62: #{tpu_custom_call.1} parent=0
    _
  %s11 = ssub.s32 1, %s9
  %s12 = scalar_select 0, %s11, %s9
  $region1: #{tpu_custom_call.1} parent=0
    #allocation2 [shape = 'u8[8192]{0}', space=vmem, size = 0x2000, scoped, tag = 'input window, operand 0, single buffered']
    #allocation3 [shape = 's32[1]{0}', space=sflag, size = 0x4, scoped, tag = 'scoped memory for tpu_custom_call.1']
    #allocation4 [shape = 's32[1]{0}', space=sflag, size = 0x4, scoped, tag = 'scoped memory for tpu_custom_call.1']
    #allocation5 [shape = 'u8[8192]{0}', space=vmem, size = 0x2000, scoped, tag = 'input window, operand 1, single buffered']
    #allocation6 [shape = 's32[1]{0}', space=sflag, size = 0x4, scoped, tag = 'scoped memory for tpu_custom_call.1']
    #allocation7 [shape = 'u8[16384]{0}', space=vmem, size = 0x4000, scoped, tag = 'input window, operand 4, single buffered']
    #allocation8 [shape = 'u8[16384]{0}', space=vmem, size = 0x4000, scoped, tag = 'input window, operand 5, single buffered']
    #allocation9 [shape = 's32[1]{0}', space=sflag, size = 0x4, scoped, tag = 'scoped memory for tpu_custom_call.1']
    #allocation10 [shape = 'u8[16384]{0}', space=vmem, size = 0x4000, scoped, tag = 'input window, operand 6, single buffered']
    #allocation11 [shape = 'u8[8192]{0}', space=vmem, size = 0x2000, scoped, tag = 'output window, operand 0, single buffered']
    %13 = vsyncpa [#allocation3], 0
    %14 = vsyncpa [#allocation6], 0
    %15 = vsyncpa [#allocation9], 0
    %16 = vsyncpa [#allocation4], 0
    // Predicated region
    $region2: #{tpu_custom_call.1} parent=1 // pred_check
      _
    $region3: #{tpu_custom_call.1} parent=1 // pred_check_branch
      %18 = sbr.rel (0) target = $region5
    $region4: #{tpu_custom_call.1} parent=1 // pred_region
      %s20 = ssub.s32 256, 256
      %21 = vsyncadd [#allocation3], %s20
      %s22 = sshll.u32 [#allocation2], 4
      %s23 = int_to_ptr.vmem [resolvable:$true] %s22
      %28 = dma.hbm_to_vmem [thread:$0]  %s0, 256, %s23, [#allocation3], 128, 128, 8
    $region5: #{tpu_custom_call.1} parent=1 // pred_fallthru
      _
    // Predicated region
    $region6: #{tpu_custom_call.1} parent=1 // pred_check
      _
    $region7: #{tpu_custom_call.1} parent=1 // pred_check_branch
      %30 = sbr.rel (0) target = $region9
    $region8: #{tpu_custom_call.1} parent=1 // pred_region
      %s32 = ssub.s32 256, 256
      %33 = vsyncadd [#allocation6], %s32
      %s34 = sshll.u32 [#allocation5], 4
      %s35 = int_to_ptr.vmem [resolvable:$true] %s34
      %40 = dma.hbm_to_vmem [thread:$0]  %s1, 256, %s35, [#allocation6], 128, 128, 8
    $region9: #{tpu_custom_call.1} parent=1 // pred_fallthru
      _
    // Predicated region
    $region10: #{tpu_custom_call.1} parent=1 // pred_check
      _
    $region11: #{tpu_custom_call.1} parent=1 // pred_check_branch
      %42 = sbr.rel (0) target = $region13
    $region12: #{tpu_custom_call.1} parent=1 // pred_region
      _
    $region13: #{tpu_custom_call.1} parent=1 // pred_fallthru
      _
    // Predicated region
    $region14: #{tpu_custom_call.1} parent=1 // pred_check
      _
    $region15: #{tpu_custom_call.1} parent=1 // pred_check_branch
      %44 = sbr.rel (0) target = $region17
    $region16: #{tpu_custom_call.1} parent=1 // pred_region
      _
    $region17: #{tpu_custom_call.1} parent=1 // pred_fallthru
      _
    // Predicated region
    $region18: #{tpu_custom_call.1} parent=1 // pred_check
      _
    $region19: #{tpu_custom_call.1} parent=1 // pred_check_branch
      %46 = sbr.rel (0) target = $region21
    $region20: #{tpu_custom_call.1} parent=1 // pred_region
      %s48 = ssub.s32 512, 512
      %49 = vsyncadd [#allocation6], %s48
      %s50 = sshll.u32 [#allocation7], 4
      %s51 = int_to_ptr.vmem [resolvable:$true] %s50
      %56 = dma.hbm_to_vmem [thread:$0]  %s4, 512, %s51, [#allocation6], 128, 128, 8
    $region21: #{tpu_custom_call.1} parent=1 // pred_fallthru
      _
    // Predicated region
    $region22: #{tpu_custom_call.1} parent=1 // pred_check
      _
    $region23: #{tpu_custom_call.1} parent=1 // pred_check_branch
      %58 = sbr.rel (0) target = $region25
    $region24: #{tpu_custom_call.1} parent=1 // pred_region
      %s60 = ssub.s32 512, 512
      %61 = vsyncadd [#allocation9], %s60
      %s62 = sshll.u32 [#allocation8], 4
      %s63 = int_to_ptr.vmem [resolvable:$true] %s62
      %68 = dma.hbm_to_vmem [thread:$0]  %s5, 512, %s63, [#allocation9], 128, 128, 8
    $region25: #{tpu_custom_call.1} parent=1 // pred_fallthru
      _
    // Predicated region
    $region26: #{tpu_custom_call.1} parent=1 // pred_check
      _
    $region27: #{tpu_custom_call.1} parent=1 // pred_check_branch
      %70 = sbr.rel (0) target = $region29
    $region28: #{tpu_custom_call.1} parent=1 // pred_region
      %s72 = ssub.s32 512, 512
      %73 = vsyncadd [#allocation9], %s72
      %s74 = sshll.u32 [#allocation10], 4
      %s75 = int_to_ptr.vmem [resolvable:$true] %s74
      %80 = dma.hbm_to_vmem [thread:$0]  %s6, 512, %s75, [#allocation9], 128, 128, 8
    $region29: #{tpu_custom_call.1} parent=1 // pred_fallthru
      _
    // Predicated region
    $region30: #{tpu_custom_call.1} parent=1 // pred_check
      _
    $region31: #{tpu_custom_call.1} parent=1 // pred_check_branch
      %82 = sbr.rel (0) target = $region33
    $region32: #{tpu_custom_call.1} parent=1 // pred_region
      _
    $region33: #{tpu_custom_call.1} parent=1 // pred_fallthru
      _
    // Predicated region
    $region34: #{tpu_custom_call.1} parent=1 // pred_check
      _
    $region35: #{tpu_custom_call.1} parent=1 // pred_check_branch
      %84 = sbr.rel (0) target = $region37
    $region36: #{tpu_custom_call.1} parent=1 // pred_region
      %85 = dma.done [#allocation3], 256
    $region37: #{tpu_custom_call.1} parent=1 // pred_fallthru
      _
    // Predicated region
    $region38: #{tpu_custom_call.1} parent=1 // pred_check
      _
    $region39: #{tpu_custom_call.1} parent=1 // pred_check_branch
      %87 = sbr.rel (0) target = $region41
    $region40: #{tpu_custom_call.1} parent=1 // pred_region
      %88 = dma.done [#allocation6], 256
    $region41: #{tpu_custom_call.1} parent=1 // pred_fallthru
      _
    // Predicated region
    $region42: #{tpu_custom_call.1} parent=1 // pred_check
      _
    $region43: #{tpu_custom_call.1} parent=1 // pred_check_branch
      %90 = sbr.rel (0) target = $region45
    $region44: #{tpu_custom_call.1} parent=1 // pred_region
      %91 = dma.done [#allocation6], 512
    $region45: #{tpu_custom_call.1} parent=1 // pred_fallthru
      _
    // Predicated region
    $region46: #{tpu_custom_call.1} parent=1 // pred_check
      _
    $region47: #{tpu_custom_call.1} parent=1 // pred_check_branch
      %93 = sbr.rel (0) target = $region49
    $region48: #{tpu_custom_call.1} parent=1 // pred_region
      %94 = dma.done [#allocation9], 512
    $region49: #{tpu_custom_call.1} parent=1 // pred_fallthru
      _
    // Predicated region
    $region50: #{tpu_custom_call.1} parent=1 // pred_check
      _
    $region51: #{tpu_custom_call.1} parent=1 // pred_check_branch
      %96 = sbr.rel (0) target = $region53
    $region52: #{tpu_custom_call.1} parent=1 // pred_region
      %97 = dma.done [#allocation9], 512
    $region53: #{tpu_custom_call.1} parent=1 // pred_fallthru
      _
    %v98 = vld [vmem:[#allocation2] sm:$0xff]
    %v99 = vld [vmem:[#allocation2 + $0x8] sm:$0xff]
    %vm100 = vcmask 261120
    %v101 = vsel %vm100, %v98, 0.0
    %102 = vadd.xlane.f32.xlu0 %v101
    %v103 = vpop.xlane.xlu0 %102
    %v104 = vsel %vm100, %v99, 0.0
    %105 = vadd.xlane.f32.xlu0 %v104
    %v106 = vpop.xlane.xlu0 %105
    %v107 = vmul.f32 %v98, %v98
    %v108 = vmul.f32 %v99, %v99
    %v109 = vsel %vm100, %v107, 0.0
    %110 = vadd.xlane.f32.xlu0 %v109
    %v111 = vpop.xlane.xlu0 %110
    %v112 = vsel %vm100, %v108, 0.0
    %113 = vadd.xlane.f32.xlu0 %v112
    %v114 = vpop.xlane.xlu0 %113
    %v115 = vmul.f32 %v103, 0.03125
    %v116 = vmul.f32 %v106, 0.03125
    %v117 = vmul.f32 %v111, 0.03125
    %v118 = vmul.f32 %v114, 0.03125
    %v119 = vmul.f32 %v115, %v115
    %v120 = vmul.f32 %v116, %v116
    %v121 = vsub.f32 %v117, %v119
    %v122 = vsub.f32 %v118, %v120
    %v123 = vsub.f32 %v98, %v115
    %v124 = vsub.f32 %v99, %v116
    %v125 = vadd.f32 %v121, 1e-05
    %v126 = vadd.f32 %v122, 1e-05
    %v127 = vrsqrt.pop %v125
    %v128 = vrsqrt.pop %v126
    %v129 = vmul.f32 %v123, %v127
    %v130 = vmul.f32 %v124, %v128
    %v131 = vld [vmem:[%s2] sm:$0x1]
    %v133 = vlaneseq
    %v134 = vshrl.u32 %v133, 7
    %v135 = vsub.s32 0, %v134
    %v136 = vrot.slane %v131, %v135
    %v138 = vmul.f32 %v129, %v136
    %v139 = vmul.f32 %v130, %v136
    %v140 = vld [vmem:[%s3] sm:$0x1]
    %v142 = vlaneseq
    %v143 = vshrl.u32 %v142, 7
    %v144 = vsub.s32 0, %v143
    %v145 = vrot.slane %v140, %v144
    %v147 = vadd.f32 %v138, %v145
    %v148 = vadd.f32 %v139, %v145
    %v149 = vld [vmem:[#allocation7] sm:$0xff]
    %v150 = vld [vmem:[#allocation7 + $0x8] sm:$0xff]
    %v151 = vld [vmem:[#allocation7 + $0x10] sm:$0xff]
    %v152 = vld [vmem:[#allocation7 + $0x18] sm:$0xff]
    %v154 = vsel %vm100, %v147, 0
    %v157 = vsel %vm100, %v148, 0
    %159 = vmatprep.subr.mxu0 0.0
    %160 = vmatpush1.msra.mxu0 0.0
    %161 = vmatprep.subr.mxu0 0.0
    %162 = vmatpush1.msra.mxu0 0.0
    %163 = vmatprep.subr.mxu0 0.0
    %164 = vmatpush1.msra.mxu0 0.0
    %165 = vmatprep.subr.mxu0 0.0
    %166 = vmatpush1.msra.mxu0 0.0
    %167 = vmatprep.subr.mxu0 0.0
    %168 = vmatpush1.msra.mxu0 0.0
    %169 = vmatprep.subr.mxu0 0.0
    %170 = vmatpush1.msra.mxu0 0.0
    %171 = vmatprep.subr.mxu0 0.0
    %172 = vmatpush1.msra.mxu0 0.0
    %173 = vmatprep.subr.mxu0 0.0
    %174 = vmatpush1.msra.mxu0 0.0
    %175 = vmatprep.subr.mxu0 0.0
    %176 = vmatpush1.msra.mxu0 0.0
    %177 = vmatprep.subr.mxu0 0.0
    %178 = vmatpush1.msra.mxu0 0.0
    %179 = vmatprep.subr.mxu0 0.0
    %180 = vmatpush1.msra.mxu0 0.0
    %181 = vmatprep.subr.mxu0 0.0
    %182 = vmatpush1.msra.mxu0 0.0
    %183 = vmatprep.subr.mxu0 0.0
    %184 = vmatpush1.msra.mxu0 %v152
    %185 = vmatprep.subr.mxu0 0.0
    %186 = vmatpush1.msra.mxu0 %v151
    %187 = vmatprep.subr.mxu0 0.0
    %188 = vmatpush1.msra.mxu0 %v150
    %189 = vmatprep.subr.mxu0 0.0
    %190 = vmatpush1.msra.mxu0 %v149
    %191 = vmatprep.subr.mxu0 0.0
    %192 = vmatpush2.msra.mxu0 0.0
    %193 = vmatprep.subr.mxu0 0.0
    %194 = vmatpush2.msra.mxu0 0.0
    %195 = vmatprep.subr.mxu0 0.0
    %196 = vmatpush2.msra.mxu0 0.0
    %197 = vmatprep.subr.mxu0 0.0
    %198 = vmatpush2.msra.mxu0 0.0
    %199 = vmatprep.subr.mxu0 0.0
    %200 = vmatpush2.msra.mxu0 0.0
    %201 = vmatprep.subr.mxu0 0.0
    %202 = vmatpush2.msra.mxu0 0.0
    %203 = vmatprep.subr.mxu0 0.0
    %204 = vmatpush2.msra.mxu0 0.0
    %205 = vmatprep.subr.mxu0 0.0
    %206 = vmatpush2.msra.mxu0 0.0
    %207 = vmatprep.subr.mxu0 0.0
    %208 = vmatpush2.msra.mxu0 0.0
    %209 = vmatprep.subr.mxu0 0.0
    %210 = vmatpush2.msra.mxu0 0.0
    %211 = vmatprep.subr.mxu0 0.0
    %212 = vmatpush2.msra.mxu0 0.0
    %213 = vmatprep.subr.mxu0 0.0
    %214 = vmatpush2.msra.mxu0 0.0
    %215 = vmatprep.subr.mxu0 0.0
    %216 = vmatpush2.msra.mxu0 0.0
    %217 = vmatprep.subr.mxu0 0.0
    %218 = vmatpush2.msra.mxu0 0.0
    %219 = vmatprep.subr.mxu0 0.0
    %220 = vmatpush2.msra.mxu0 0.0
    %221 = vmatprep.subr.mxu0 0.0
    %222 = vmatpush2.msra.mxu0 0.0
    %223 = vmatprep.mubr.f32.mxu0 0.0
    %224 = vmatmul.mubr.f32.gmra.mxu0 %v154
    %v225 = vpop.f32.mrf.mxu0
    %v226 = vadd.f32 0.0, %v225
    %v227 = vpop.f32.mrf.mxu0
    %228 = vmatprep.mubr.f32.mxu0 0.0
    %229 = vmatmul.mubr.f32.gmra.mxu0 %v157
    %v230 = vpop.f32.mrf.mxu0
    %v231 = vadd.f32 0.0, %v230
    %v232 = vpop.f32.mrf.mxu0
    %233 = vdwg.mxu0
    %v234 = vmul.f32 %v226, 0.35355338
    %v235 = vmul.f32 %v231, 0.35355338
    %v236 = vld [vmem:[#allocation5] sm:$0xff]
    %v237 = vld [vmem:[#allocation5 + $0x8] sm:$0xff]
    %v238 = vld [vmem:[#allocation8] sm:$0xff]
    %v239 = vld [vmem:[#allocation8 + $0x8] sm:$0xff]
    %v240 = vld [vmem:[#allocation8 + $0x10] sm:$0xff]
    %v241 = vld [vmem:[#allocation8 + $0x18] sm:$0xff]
    %v243 = vsel %vm100, %v236, 0
    %v246 = vsel %vm100, %v237, 0
    %248 = vmatprep.subr.mxu0 0.0
    %249 = vmatpush1.msra.mxu0 0.0
    %250 = vmatprep.subr.mxu0 0.0
    %251 = vmatpush1.msra.mxu0 0.0
    %252 = vmatprep.subr.mxu0 0.0
    %253 = vmatpush1.msra.mxu0 0.0
    %254 = vmatprep.subr.mxu0 0.0
    %255 = vmatpush1.msra.mxu0 0.0
    %256 = vmatprep.subr.mxu0 0.0
    %257 = vmatpush1.msra.mxu0 0.0
    %258 = vmatprep.subr.mxu0 0.0
    %259 = vmatpush1.msra.mxu0 0.0
    %260 = vmatprep.subr.mxu0 0.0
    %261 = vmatpush1.msra.mxu0 0.0
    %262 = vmatprep.subr.mxu0 0.0
    %263 = vmatpush1.msra.mxu0 0.0
    %264 = vmatprep.subr.mxu0 0.0
    %265 = vmatpush1.msra.mxu0 0.0
    %266 = vmatprep.subr.mxu0 0.0
    %267 = vmatpush1.msra.mxu0 0.0
    %268 = vmatprep.subr.mxu0 0.0
    %269 = vmatpush1.msra.mxu0 0.0
    %270 = vmatprep.subr.mxu0 0.0
    %271 = vmatpush1.msra.mxu0 0.0
    %272 = vmatprep.subr.mxu0 0.0
    %273 = vmatpush1.msra.mxu0 %v241
    %274 = vmatprep.subr.mxu0 0.0
    %275 = vmatpush1.msra.mxu0 %v240
    %276 = vmatprep.subr.mxu0 0.0
    %277 = vmatpush1.msra.mxu0 %v239
    %278 = vmatprep.subr.mxu0 0.0
    %279 = vmatpush1.msra.mxu0 %v238
    %280 = vmatprep.subr.mxu0 0.0
    %281 = vmatpush2.msra.mxu0 0.0
    %282 = vmatprep.subr.mxu0 0.0
    %283 = vmatpush2.msra.mxu0 0.0
    %284 = vmatprep.subr.mxu0 0.0
    %285 = vmatpush2.msra.mxu0 0.0
    %286 = vmatprep.subr.mxu0 0.0
    %287 = vmatpush2.msra.mxu0 0.0
    %288 = vmatprep.subr.mxu0 0.0
    %289 = vmatpush2.msra.mxu0 0.0
    %290 = vmatprep.subr.mxu0 0.0
    %291 = vmatpush2.msra.mxu0 0.0
    %292 = vmatprep.subr.mxu0 0.0
    %293 = vmatpush2.msra.mxu0 0.0
    %294 = vmatprep.subr.mxu0 0.0
    %295 = vmatpush2.msra.mxu0 0.0
    %296 = vmatprep.subr.mxu0 0.0
    %297 = vmatpush2.msra.mxu0 0.0
    %298 = vmatprep.subr.mxu0 0.0
    %299 = vmatpush2.msra.mxu0 0.0
    %300 = vmatprep.subr.mxu0 0.0
    %301 = vmatpush2.msra.mxu0 0.0
    %302 = vmatprep.subr.mxu0 0.0
    %303 = vmatpush2.msra.mxu0 0.0
    %304 = vmatprep.subr.mxu0 0.0
    %305 = vmatpush2.msra.mxu0 0.0
    %306 = vmatprep.subr.mxu0 0.0
    %307 = vmatpush2.msra.mxu0 0.0
    %308 = vmatprep.subr.mxu0 0.0
    %309 = vmatpush2.msra.mxu0 0.0
    %310 = vmatprep.subr.mxu0 0.0
    %311 = vmatpush2.msra.mxu0 0.0
    %312 = vmatprep.mubr.f32.mxu0 0.0
    %313 = vmatmul.mubr.f32.gmra.mxu0 %v243
    %v314 = vpop.f32.mrf.mxu0
    %v315 = vadd.f32 0.0, %v314
    %v316 = vpop.f32.mrf.mxu0
    %317 = vmatprep.mubr.f32.mxu0 0.0
    %318 = vmatmul.mubr.f32.gmra.mxu0 %v246
    %v319 = vpop.f32.mrf.mxu0
    %v320 = vadd.f32 0.0, %v319
    %v321 = vpop.f32.mrf.mxu0
    %322 = vdwg.mxu0
    %vm323 = vcmask 64512
    %v325 = vsel %vm323, %v234, 0
    %v328 = vsel %vm323, %v315, 0
    %330 = vmatprep.subr.mxu0 0.0
    %331 = vmatpush1.xpose.msra.mxu0 0.0
    %332 = vmatprep.subr.mxu0 0.0
    %333 = vmatpush1.xpose.msra.mxu0 0.0
    %334 = vmatprep.subr.mxu0 0.0
    %335 = vmatpush1.xpose.msra.mxu0 0.0
    %336 = vmatprep.subr.mxu0 0.0
    %337 = vmatpush1.xpose.msra.mxu0 0.0
    %338 = vmatprep.subr.mxu0 0.0
    %339 = vmatpush1.xpose.msra.mxu0 0.0
    %340 = vmatprep.subr.mxu0 0.0
    %341 = vmatpush1.xpose.msra.mxu0 0.0
    %342 = vmatprep.subr.mxu0 0.0
    %343 = vmatpush1.xpose.msra.mxu0 0.0
    %344 = vmatprep.subr.mxu0 0.0
    %345 = vmatpush1.xpose.msra.mxu0 0.0
    %346 = vmatprep.subr.mxu0 0.0
    %347 = vmatpush1.xpose.msra.mxu0 0.0
    %348 = vmatprep.subr.mxu0 0.0
    %349 = vmatpush1.xpose.msra.mxu0 0.0
    %350 = vmatprep.subr.mxu0 0.0
    %351 = vmatpush1.xpose.msra.mxu0 0.0
    %352 = vmatprep.subr.mxu0 0.0
    %353 = vmatpush1.xpose.msra.mxu0 0.0
    %354 = vmatprep.subr.mxu0 0.0
    %355 = vmatpush1.xpose.msra.mxu0 0.0
    %356 = vmatprep.subr.mxu0 0.0
    %357 = vmatpush1.xpose.msra.mxu0 0.0
    %358 = vmatprep.subr.mxu0 0.0
    %359 = vmatpush1.xpose.msra.mxu0 0.0
    %360 = vmatprep.subr.mxu0 0.0
    %361 = vmatpush1.xpose.msra.mxu0 %v328
    %362 = vmatprep.subr.mxu0 0.0
    %363 = vmatpush2.xpose.msra.mxu0 0.0
    %364 = vmatprep.subr.mxu0 0.0
    %365 = vmatpush2.xpose.msra.mxu0 0.0
    %366 = vmatprep.subr.mxu0 0.0
    %367 = vmatpush2.xpose.msra.mxu0 0.0
    %368 = vmatprep.subr.mxu0 0.0
    %369 = vmatpush2.xpose.msra.mxu0 0.0
    %370 = vmatprep.subr.mxu0 0.0
    %371 = vmatpush2.xpose.msra.mxu0 0.0
    %372 = vmatprep.subr.mxu0 0.0
    %373 = vmatpush2.xpose.msra.mxu0 0.0
    %374 = vmatprep.subr.mxu0 0.0
    %375 = vmatpush2.xpose.msra.mxu0 0.0
    %376 = vmatprep.subr.mxu0 0.0
    %377 = vmatpush2.xpose.msra.mxu0 0.0
    %378 = vmatprep.subr.mxu0 0.0
    %379 = vmatpush2.xpose.msra.mxu0 0.0
    %380 = vmatprep.subr.mxu0 0.0
    %381 = vmatpush2.xpose.msra.mxu0 0.0
    %382 = vmatprep.subr.mxu0 0.0
    %383 = vmatpush2.xpose.msra.mxu0 0.0
    %384 = vmatprep.subr.mxu0 0.0
    %385 = vmatpush2.xpose.msra.mxu0 0.0
    %386 = vmatprep.subr.mxu0 0.0
    %387 = vmatpush2.xpose.msra.mxu0 0.0
    %388 = vmatprep.subr.mxu0 0.0
    %389 = vmatpush2.xpose.msra.mxu0 0.0
    %390 = vmatprep.subr.mxu0 0.0
    %391 = vmatpush2.xpose.msra.mxu0 0.0
    %392 = vmatprep.subr.mxu0 0.0
    %393 = vmatpush2.xpose.msra.mxu0 0.0
    %394 = vmatprep.mubr.f32.mxu0 0.0
    %395 = vmatmul.mubr.f32.gmra.mxu0 %v325
    %v396 = vpop.f32.mrf.mxu0
    %v397 = vadd.f32 0.0, %v396
    %v398 = vpop.f32.mrf.mxu0
    %399 = vdwg.mxu0
    %400 = vrot.lane.b32.xlu0 %v234, 120
    %v401 = vpop.permute.xlu0 %400
    %402 = vrot.lane.b32.xlu0 %v315, 120
    %v403 = vpop.permute.xlu0 %402
    %v404 = vsel %vm323, %v401, 0
    %v406 = vsel %vm323, %v403, 0
    %408 = vmatprep.subr.mxu0 0.0
    %409 = vmatpush1.xpose.msra.mxu0 0.0
    %410 = vmatprep.subr.mxu0 0.0
    %411 = vmatpush1.xpose.msra.mxu0 0.0
    %412 = vmatprep.subr.mxu0 0.0
    %413 = vmatpush1.xpose.msra.mxu0 0.0
    %414 = vmatprep.subr.mxu0 0.0
    %415 = vmatpush1.xpose.msra.mxu0 0.0
    %416 = vmatprep.subr.mxu0 0.0
    %417 = vmatpush1.xpose.msra.mxu0 0.0
    %418 = vmatprep.subr.mxu0 0.0
    %419 = vmatpush1.xpose.msra.mxu0 0.0
    %420 = vmatprep.subr.mxu0 0.0
    %421 = vmatpush1.xpose.msra.mxu0 0.0
    %422 = vmatprep.subr.mxu0 0.0
    %423 = vmatpush1.xpose.msra.mxu0 0.0
    %424 = vmatprep.subr.mxu0 0.0
    %425 = vmatpush1.xpose.msra.mxu0 0.0
    %426 = vmatprep.subr.mxu0 0.0
    %427 = vmatpush1.xpose.msra.mxu0 0.0
    %428 = vmatprep.subr.mxu0 0.0
    %429 = vmatpush1.xpose.msra.mxu0 0.0
    %430 = vmatprep.subr.mxu0 0.0
    %431 = vmatpush1.xpose.msra.mxu0 0.0
    %432 = vmatprep.subr.mxu0 0.0
    %433 = vmatpush1.xpose.msra.mxu0 0.0
    %434 = vmatprep.subr.mxu0 0.0
    %435 = vmatpush1.xpose.msra.mxu0 0.0
    %436 = vmatprep.subr.mxu0 0.0
    %437 = vmatpush1.xpose.msra.mxu0 0.0
    %438 = vmatprep.subr.mxu0 0.0
    %439 = vmatpush1.xpose.msra.mxu0 %v406
    %440 = vmatprep.subr.mxu0 0.0
    %441 = vmatpush2.xpose.msra.mxu0 0.0
    %442 = vmatprep.subr.mxu0 0.0
    %443 = vmatpush2.xpose.msra.mxu0 0.0
    %444 = vmatprep.subr.mxu0 0.0
    %445 = vmatpush2.xpose.msra.mxu0 0.0
    %446 = vmatprep.subr.mxu0 0.0
    %447 = vmatpush2.xpose.msra.mxu0 0.0
    %448 = vmatprep.subr.mxu0 0.0
    %449 = vmatpush2.xpose.msra.mxu0 0.0
    %450 = vmatprep.subr.mxu0 0.0
    %451 = vmatpush2.xpose.msra.mxu0 0.0
    %452 = vmatprep.subr.mxu0 0.0
    %453 = vmatpush2.xpose.msra.mxu0 0.0
    %454 = vmatprep.subr.mxu0 0.0
    %455 = vmatpush2.xpose.msra.mxu0 0.0
    %456 = vmatprep.subr.mxu0 0.0
    %457 = vmatpush2.xpose.msra.mxu0 0.0
    %458 = vmatprep.subr.mxu0 0.0
    %459 = vmatpush2.xpose.msra.mxu0 0.0
    %460 = vmatprep.subr.mxu0 0.0
    %461 = vmatpush2.xpose.msra.mxu0 0.0
    %462 = vmatprep.subr.mxu0 0.0
    %463 = vmatpush2.xpose.msra.mxu0 0.0
    %464 = vmatprep.subr.mxu0 0.0
    %465 = vmatpush2.xpose.msra.mxu0 0.0
    %466 = vmatprep.subr.mxu0 0.0
    %467 = vmatpush2.xpose.msra.mxu0 0.0
    %468 = vmatprep.subr.mxu0 0.0
    %469 = vmatpush2.xpose.msra.mxu0 0.0
    %470 = vmatprep.subr.mxu0 0.0
    %471 = vmatpush2.xpose.msra.mxu0 0.0
    %472 = vmatprep.mubr.f32.mxu0 0.0
    %473 = vmatmul.mubr.f32.gmra.mxu0 %v404
    %v474 = vpop.f32.mrf.mxu0
    %v475 = vadd.f32 0.0, %v474
    %v476 = vpop.f32.mrf.mxu0
    %477 = vdwg.mxu0
    %478 = vrot.lane.b32.xlu0 %v234, 112
    %v479 = vpop.permute.xlu0 %478
    %480 = vrot.lane.b32.xlu0 %v315, 112
    %v481 = vpop.permute.xlu0 %480
    %v482 = vsel %vm323, %v479, 0
    %v484 = vsel %vm323, %v481, 0
    %486 = vmatprep.subr.mxu0 0.0
    %487 = vmatpush1.xpose.msra.mxu0 0.0
    %488 = vmatprep.subr.mxu0 0.0
    %489 = vmatpush1.xpose.msra.mxu0 0.0
    %490 = vmatprep.subr.mxu0 0.0
    %491 = vmatpush1.xpose.msra.mxu0 0.0
    %492 = vmatprep.subr.mxu0 0.0
    %493 = vmatpush1.xpose.msra.mxu0 0.0
    %494 = vmatprep.subr.mxu0 0.0
    %495 = vmatpush1.xpose.msra.mxu0 0.0
    %496 = vmatprep.subr.mxu0 0.0
    %497 = vmatpush1.xpose.msra.mxu0 0.0
    %498 = vmatprep.subr.mxu0 0.0
    %499 = vmatpush1.xpose.msra.mxu0 0.0
    %500 = vmatprep.subr.mxu0 0.0
    %501 = vmatpush1.xpose.msra.mxu0 0.0
    %502 = vmatprep.subr.mxu0 0.0
    %503 = vmatpush1.xpose.msra.mxu0 0.0
    %504 = vmatprep.subr.mxu0 0.0
    %505 = vmatpush1.xpose.msra.mxu0 0.0
    %506 = vmatprep.subr.mxu0 0.0
    %507 = vmatpush1.xpose.msra.mxu0 0.0
    %508 = vmatprep.subr.mxu0 0.0
    %509 = vmatpush1.xpose.msra.mxu0 0.0
    %510 = vmatprep.subr.mxu0 0.0
    %511 = vmatpush1.xpose.msra.mxu0 0.0
    %512 = vmatprep.subr.mxu0 0.0
    %513 = vmatpush1.xpose.msra.mxu0 0.0
    %514 = vmatprep.subr.mxu0 0.0
    %515 = vmatpush1.xpose.msra.mxu0 0.0
    %516 = vmatprep.subr.mxu0 0.0
    %517 = vmatpush1.xpose.msra.mxu0 %v484
    %518 = vmatprep.subr.mxu0 0.0
    %519 = vmatpush2.xpose.msra.mxu0 0.0
    %520 = vmatprep.subr.mxu0 0.0
    %521 = vmatpush2.xpose.msra.mxu0 0.0
    %522 = vmatprep.subr.mxu0 0.0
    %523 = vmatpush2.xpose.msra.mxu0 0.0
    %524 = vmatprep.subr.mxu0 0.0
    %525 = vmatpush2.xpose.msra.mxu0 0.0
    %526 = vmatprep.subr.mxu0 0.0
    %527 = vmatpush2.xpose.msra.mxu0 0.0
    %528 = vmatprep.subr.mxu0 0.0
    %529 = vmatpush2.xpose.msra.mxu0 0.0
    %530 = vmatprep.subr.mxu0 0.0
    %531 = vmatpush2.xpose.msra.mxu0 0.0
    %532 = vmatprep.subr.mxu0 0.0
    %533 = vmatpush2.xpose.msra.mxu0 0.0
    %534 = vmatprep.subr.mxu0 0.0
    %535 = vmatpush2.xpose.msra.mxu0 0.0
    %536 = vmatprep.subr.mxu0 0.0
    %537 = vmatpush2.xpose.msra.mxu0 0.0
    %538 = vmatprep.subr.mxu0 0.0
    %539 = vmatpush2.xpose.msra.mxu0 0.0
    %540 = vmatprep.subr.mxu0 0.0
    %541 = vmatpush2.xpose.msra.mxu0 0.0
    %542 = vmatprep.subr.mxu0 0.0
    %543 = vmatpush2.xpose.msra.mxu0 0.0
    %544 = vmatprep.subr.mxu0 0.0
    %545 = vmatpush2.xpose.msra.mxu0 0.0
    %546 = vmatprep.subr.mxu0 0.0
    %547 = vmatpush2.xpose.msra.mxu0 0.0
    %548 = vmatprep.subr.mxu0 0.0
    %549 = vmatpush2.xpose.msra.mxu0 0.0
    %550 = vmatprep.mubr.f32.mxu0 0.0
    %551 = vmatmul.mubr.f32.gmra.mxu0 %v482
    %v552 = vpop.f32.mrf.mxu0
    %v553 = vadd.f32 0.0, %v552
    %v554 = vpop.f32.mrf.mxu0
    %555 = vdwg.mxu0
    %556 = vrot.lane.b32.xlu0 %v234, 104
    %v557 = vpop.permute.xlu0 %556
    %558 = vrot.lane.b32.xlu0 %v315, 104
    %v559 = vpop.permute.xlu0 %558
    %v560 = vsel %vm323, %v557, 0
    %v562 = vsel %vm323, %v559, 0
    %564 = vmatprep.subr.mxu0 0.0
    %565 = vmatpush1.xpose.msra.mxu0 0.0
    %566 = vmatprep.subr.mxu0 0.0
    %567 = vmatpush1.xpose.msra.mxu0 0.0
    %568 = vmatprep.subr.mxu0 0.0
    %569 = vmatpush1.xpose.msra.mxu0 0.0
    %570 = vmatprep.subr.mxu0 0.0
    %571 = vmatpush1.xpose.msra.mxu0 0.0
    %572 = vmatprep.subr.mxu0 0.0
    %573 = vmatpush1.xpose.msra.mxu0 0.0
    %574 = vmatprep.subr.mxu0 0.0
    %575 = vmatpush1.xpose.msra.mxu0 0.0
    %576 = vmatprep.subr.mxu0 0.0
    %577 = vmatpush1.xpose.msra.mxu0 0.0
    %578 = vmatprep.subr.mxu0 0.0
    %579 = vmatpush1.xpose.msra.mxu0 0.0
    %580 = vmatprep.subr.mxu0 0.0
    %581 = vmatpush1.xpose.msra.mxu0 0.0
    %582 = vmatprep.subr.mxu0 0.0
    %583 = vmatpush1.xpose.msra.mxu0 0.0
    %584 = vmatprep.subr.mxu0 0.0
    %585 = vmatpush1.xpose.msra.mxu0 0.0
    %586 = vmatprep.subr.mxu0 0.0
    %587 = vmatpush1.xpose.msra.mxu0 0.0
    %588 = vmatprep.subr.mxu0 0.0
    %589 = vmatpush1.xpose.msra.mxu0 0.0
    %590 = vmatprep.subr.mxu0 0.0
    %591 = vmatpush1.xpose.msra.mxu0 0.0
    %592 = vmatprep.subr.mxu0 0.0
    %593 = vmatpush1.xpose.msra.mxu0 0.0
    %594 = vmatprep.subr.mxu0 0.0
    %595 = vmatpush1.xpose.msra.mxu0 %v562
    %596 = vmatprep.subr.mxu0 0.0
    %597 = vmatpush2.xpose.msra.mxu0 0.0
    %598 = vmatprep.subr.mxu0 0.0
    %599 = vmatpush2.xpose.msra.mxu0 0.0
    %600 = vmatprep.subr.mxu0 0.0
    %601 = vmatpush2.xpose.msra.mxu0 0.0
    %602 = vmatprep.subr.mxu0 0.0
    %603 = vmatpush2.xpose.msra.mxu0 0.0
    %604 = vmatprep.subr.mxu0 0.0
    %605 = vmatpush2.xpose.msra.mxu0 0.0
    %606 = vmatprep.subr.mxu0 0.0
    %607 = vmatpush2.xpose.msra.mxu0 0.0
    %608 = vmatprep.subr.mxu0 0.0
    %609 = vmatpush2.xpose.msra.mxu0 0.0
    %610 = vmatprep.subr.mxu0 0.0
    %611 = vmatpush2.xpose.msra.mxu0 0.0
    %612 = vmatprep.subr.mxu0 0.0
    %613 = vmatpush2.xpose.msra.mxu0 0.0
    %614 = vmatprep.subr.mxu0 0.0
    %615 = vmatpush2.xpose.msra.mxu0 0.0
    %616 = vmatprep.subr.mxu0 0.0
    %617 = vmatpush2.xpose.msra.mxu0 0.0
    %618 = vmatprep.subr.mxu0 0.0
    %619 = vmatpush2.xpose.msra.mxu0 0.0
    %620 = vmatprep.subr.mxu0 0.0
    %621 = vmatpush2.xpose.msra.mxu0 0.0
    %622 = vmatprep.subr.mxu0 0.0
    %623 = vmatpush2.xpose.msra.mxu0 0.0
    %624 = vmatprep.subr.mxu0 0.0
    %625 = vmatpush2.xpose.msra.mxu0 0.0
    %626 = vmatprep.subr.mxu0 0.0
    %627 = vmatpush2.xpose.msra.mxu0 0.0
    %628 = vmatprep.mubr.f32.mxu0 0.0
    %629 = vmatmul.mubr.f32.gmra.mxu0 %v560
    %v630 = vpop.f32.mrf.mxu0
    %v631 = vadd.f32 0.0, %v630
    %v632 = vpop.f32.mrf.mxu0
    %633 = vdwg.mxu0
    %v635 = vsel %vm323, %v235, 0
    %v638 = vsel %vm323, %v320, 0
    %640 = vmatprep.subr.mxu0 0.0
    %641 = vmatpush1.xpose.msra.mxu0 0.0
    %642 = vmatprep.subr.mxu0 0.0
    %643 = vmatpush1.xpose.msra.mxu0 0.0
    %644 = vmatprep.subr.mxu0 0.0
    %645 = vmatpush1.xpose.msra.mxu0 0.0
    %646 = vmatprep.subr.mxu0 0.0
    %647 = vmatpush1.xpose.msra.mxu0 0.0
    %648 = vmatprep.subr.mxu0 0.0
    %649 = vmatpush1.xpose.msra.mxu0 0.0
    %650 = vmatprep.subr.mxu0 0.0
    %651 = vmatpush1.xpose.msra.mxu0 0.0
    %652 = vmatprep.subr.mxu0 0.0
    %653 = vmatpush1.xpose.msra.mxu0 0.0
    %654 = vmatprep.subr.mxu0 0.0
    %655 = vmatpush1.xpose.msra.mxu0 0.0
    %656 = vmatprep.subr.mxu0 0.0
    %657 = vmatpush1.xpose.msra.mxu0 0.0
    %658 = vmatprep.subr.mxu0 0.0
    %659 = vmatpush1.xpose.msra.mxu0 0.0
    %660 = vmatprep.subr.mxu0 0.0
    %661 = vmatpush1.xpose.msra.mxu0 0.0
    %662 = vmatprep.subr.mxu0 0.0
    %663 = vmatpush1.xpose.msra.mxu0 0.0
    %664 = vmatprep.subr.mxu0 0.0
    %665 = vmatpush1.xpose.msra.mxu0 0.0
    %666 = vmatprep.subr.mxu0 0.0
    %667 = vmatpush1.xpose.msra.mxu0 0.0
    %668 = vmatprep.subr.mxu0 0.0
    %669 = vmatpush1.xpose.msra.mxu0 0.0
    %670 = vmatprep.subr.mxu0 0.0
    %671 = vmatpush1.xpose.msra.mxu0 %v638
    %672 = vmatprep.subr.mxu0 0.0
    %673 = vmatpush2.xpose.msra.mxu0 0.0
    %674 = vmatprep.subr.mxu0 0.0
    %675 = vmatpush2.xpose.msra.mxu0 0.0
    %676 = vmatprep.subr.mxu0 0.0
    %677 = vmatpush2.xpose.msra.mxu0 0.0
    %678 = vmatprep.subr.mxu0 0.0
    %679 = vmatpush2.xpose.msra.mxu0 0.0
    %680 = vmatprep.subr.mxu0 0.0
    %681 = vmatpush2.xpose.msra.mxu0 0.0
    %682 = vmatprep.subr.mxu0 0.0
    %683 = vmatpush2.xpose.msra.mxu0 0.0
    %684 = vmatprep.subr.mxu0 0.0
    %685 = vmatpush2.xpose.msra.mxu0 0.0
    %686 = vmatprep.subr.mxu0 0.0
    %687 = vmatpush2.xpose.msra.mxu0 0.0
    %688 = vmatprep.subr.mxu0 0.0
    %689 = vmatpush2.xpose.msra.mxu0 0.0
    %690 = vmatprep.subr.mxu0 0.0
    %691 = vmatpush2.xpose.msra.mxu0 0.0
    %692 = vmatprep.subr.mxu0 0.0
    %693 = vmatpush2.xpose.msra.mxu0 0.0
    %694 = vmatprep.subr.mxu0 0.0
    %695 = vmatpush2.xpose.msra.mxu0 0.0
    %696 = vmatprep.subr.mxu0 0.0
    %697 = vmatpush2.xpose.msra.mxu0 0.0
    %698 = vmatprep.subr.mxu0 0.0
    %699 = vmatpush2.xpose.msra.mxu0 0.0
    %700 = vmatprep.subr.mxu0 0.0
    %701 = vmatpush2.xpose.msra.mxu0 0.0
    %702 = vmatprep.subr.mxu0 0.0
    %703 = vmatpush2.xpose.msra.mxu0 0.0
    %704 = vmatprep.mubr.f32.mxu0 0.0
    %705 = vmatmul.mubr.f32.gmra.mxu0 %v635
    %v706 = vpop.f32.mrf.mxu0
    %v707 = vadd.f32 0.0, %v706
    %v708 = vpop.f32.mrf.mxu0
    %709 = vdwg.mxu0
    %710 = vrot.lane.b32.xlu0 %v235, 120
    %v711 = vpop.permute.xlu0 %710
    %712 = vrot.lane.b32.xlu0 %v320, 120
    %v713 = vpop.permute.xlu0 %712
    %v714 = vsel %vm323, %v711, 0
    %v716 = vsel %vm323, %v713, 0
    %718 = vmatprep.subr.mxu0 0.0
    %719 = vmatpush1.xpose.msra.mxu0 0.0
    %720 = vmatprep.subr.mxu0 0.0
    %721 = vmatpush1.xpose.msra.mxu0 0.0
    %722 = vmatprep.subr.mxu0 0.0
    %723 = vmatpush1.xpose.msra.mxu0 0.0
    %724 = vmatprep.subr.mxu0 0.0
    %725 = vmatpush1.xpose.msra.mxu0 0.0
    %726 = vmatprep.subr.mxu0 0.0
    %727 = vmatpush1.xpose.msra.mxu0 0.0
    %728 = vmatprep.subr.mxu0 0.0
    %729 = vmatpush1.xpose.msra.mxu0 0.0
    %730 = vmatprep.subr.mxu0 0.0
    %731 = vmatpush1.xpose.msra.mxu0 0.0
    %732 = vmatprep.subr.mxu0 0.0
    %733 = vmatpush1.xpose.msra.mxu0 0.0
    %734 = vmatprep.subr.mxu0 0.0
    %735 = vmatpush1.xpose.msra.mxu0 0.0
    %736 = vmatprep.subr.mxu0 0.0
    %737 = vmatpush1.xpose.msra.mxu0 0.0
    %738 = vmatprep.subr.mxu0 0.0
    %739 = vmatpush1.xpose.msra.mxu0 0.0
    %740 = vmatprep.subr.mxu0 0.0
    %741 = vmatpush1.xpose.msra.mxu0 0.0
    %742 = vmatprep.subr.mxu0 0.0
    %743 = vmatpush1.xpose.msra.mxu0 0.0
    %744 = vmatprep.subr.mxu0 0.0
    %745 = vmatpush1.xpose.msra.mxu0 0.0
    %746 = vmatprep.subr.mxu0 0.0
    %747 = vmatpush1.xpose.msra.mxu0 0.0
    %748 = vmatprep.subr.mxu0 0.0
    %749 = vmatpush1.xpose.msra.mxu0 %v716
    %750 = vmatprep.subr.mxu0 0.0
    %751 = vmatpush2.xpose.msra.mxu0 0.0
    %752 = vmatprep.subr.mxu0 0.0
    %753 = vmatpush2.xpose.msra.mxu0 0.0
    %754 = vmatprep.subr.mxu0 0.0
    %755 = vmatpush2.xpose.msra.mxu0 0.0
    %756 = vmatprep.subr.mxu0 0.0
    %757 = vmatpush2.xpose.msra.mxu0 0.0
    %758 = vmatprep.subr.mxu0 0.0
    %759 = vmatpush2.xpose.msra.mxu0 0.0
    %760 = vmatprep.subr.mxu0 0.0
    %761 = vmatpush2.xpose.msra.mxu0 0.0
    %762 = vmatprep.subr.mxu0 0.0
    %763 = vmatpush2.xpose.msra.mxu0 0.0
    %764 = vmatprep.subr.mxu0 0.0
    %765 = vmatpush2.xpose.msra.mxu0 0.0
    %766 = vmatprep.subr.mxu0 0.0
    %767 = vmatpush2.xpose.msra.mxu0 0.0
    %768 = vmatprep.subr.mxu0 0.0
    %769 = vmatpush2.xpose.msra.mxu0 0.0
    %770 = vmatprep.subr.mxu0 0.0
    %771 = vmatpush2.xpose.msra.mxu0 0.0
    %772 = vmatprep.subr.mxu0 0.0
    %773 = vmatpush2.xpose.msra.mxu0 0.0
    %774 = vmatprep.subr.mxu0 0.0
    %775 = vmatpush2.xpose.msra.mxu0 0.0
    %776 = vmatprep.subr.mxu0 0.0
    %777 = vmatpush2.xpose.msra.mxu0 0.0
    %778 = vmatprep.subr.mxu0 0.0
    %779 = vmatpush2.xpose.msra.mxu0 0.0
    %780 = vmatprep.subr.mxu0 0.0
    %781 = vmatpush2.xpose.msra.mxu0 0.0
    %782 = vmatprep.mubr.f32.mxu0 0.0
    %783 = vmatmul.mubr.f32.gmra.mxu0 %v714
    %v784 = vpop.f32.mrf.mxu0
    %v785 = vadd.f32 0.0, %v784
    %v786 = vpop.f32.mrf.mxu0
    %787 = vdwg.mxu0
    %788 = vrot.lane.b32.xlu0 %v235, 112
    %v789 = vpop.permute.xlu0 %788
    %790 = vrot.lane.b32.xlu0 %v320, 112
    %v791 = vpop.permute.xlu0 %790
    %v792 = vsel %vm323, %v789, 0
    %v794 = vsel %vm323, %v791, 0
    %796 = vmatprep.subr.mxu0 0.0
    %797 = vmatpush1.xpose.msra.mxu0 0.0
    %798 = vmatprep.subr.mxu0 0.0
    %799 = vmatpush1.xpose.msra.mxu0 0.0
    %800 = vmatprep.subr.mxu0 0.0
    %801 = vmatpush1.xpose.msra.mxu0 0.0
    %802 = vmatprep.subr.mxu0 0.0
    %803 = vmatpush1.xpose.msra.mxu0 0.0
    %804 = vmatprep.subr.mxu0 0.0
    %805 = vmatpush1.xpose.msra.mxu0 0.0
    %806 = vmatprep.subr.mxu0 0.0
    %807 = vmatpush1.xpose.msra.mxu0 0.0
    %808 = vmatprep.subr.mxu0 0.0
    %809 = vmatpush1.xpose.msra.mxu0 0.0
    %810 = vmatprep.subr.mxu0 0.0
    %811 = vmatpush1.xpose.msra.mxu0 0.0
    %812 = vmatprep.subr.mxu0 0.0
    %813 = vmatpush1.xpose.msra.mxu0 0.0
    %814 = vmatprep.subr.mxu0 0.0
    %815 = vmatpush1.xpose.msra.mxu0 0.0
    %816 = vmatprep.subr.mxu0 0.0
    %817 = vmatpush1.xpose.msra.mxu0 0.0
    %818 = vmatprep.subr.mxu0 0.0
    %819 = vmatpush1.xpose.msra.mxu0 0.0
    %820 = vmatprep.subr.mxu0 0.0
    %821 = vmatpush1.xpose.msra.mxu0 0.0
    %822 = vmatprep.subr.mxu0 0.0
    %823 = vmatpush1.xpose.msra.mxu0 0.0
    %824 = vmatprep.subr.mxu0 0.0
    %825 = vmatpush1.xpose.msra.mxu0 0.0
    %826 = vmatprep.subr.mxu0 0.0
    %827 = vmatpush1.xpose.msra.mxu0 %v794
    %828 = vmatprep.subr.mxu0 0.0
    %829 = vmatpush2.xpose.msra.mxu0 0.0
    %830 = vmatprep.subr.mxu0 0.0
    %831 = vmatpush2.xpose.msra.mxu0 0.0
    %832 = vmatprep.subr.mxu0 0.0
    %833 = vmatpush2.xpose.msra.mxu0 0.0
    %834 = vmatprep.subr.mxu0 0.0
    %835 = vmatpush2.xpose.msra.mxu0 0.0
    %836 = vmatprep.subr.mxu0 0.0
    %837 = vmatpush2.xpose.msra.mxu0 0.0
    %838 = vmatprep.subr.mxu0 0.0
    %839 = vmatpush2.xpose.msra.mxu0 0.0
    %840 = vmatprep.subr.mxu0 0.0
    %841 = vmatpush2.xpose.msra.mxu0 0.0
    %842 = vmatprep.subr.mxu0 0.0
    %843 = vmatpush2.xpose.msra.mxu0 0.0
    %844 = vmatprep.subr.mxu0 0.0
    %845 = vmatpush2.xpose.msra.mxu0 0.0
    %846 = vmatprep.subr.mxu0 0.0
    %847 = vmatpush2.xpose.msra.mxu0 0.0
    %848 = vmatprep.subr.mxu0 0.0
    %849 = vmatpush2.xpose.msra.mxu0 0.0
    %850 = vmatprep.subr.mxu0 0.0
    %851 = vmatpush2.xpose.msra.mxu0 0.0
    %852 = vmatprep.subr.mxu0 0.0
    %853 = vmatpush2.xpose.msra.mxu0 0.0
    %854 = vmatprep.subr.mxu0 0.0
    %855 = vmatpush2.xpose.msra.mxu0 0.0
    %856 = vmatprep.subr.mxu0 0.0
    %857 = vmatpush2.xpose.msra.mxu0 0.0
    %858 = vmatprep.subr.mxu0 0.0
    %859 = vmatpush2.xpose.msra.mxu0 0.0
    %860 = vmatprep.mubr.f32.mxu0 0.0
    %861 = vmatmul.mubr.f32.gmra.mxu0 %v792
    %v862 = vpop.f32.mrf.mxu0
    %v863 = vadd.f32 0.0, %v862
    %v864 = vpop.f32.mrf.mxu0
    %865 = vdwg.mxu0
    %866 = vrot.lane.b32.xlu0 %v235, 104
    %v867 = vpop.permute.xlu0 %866
    %868 = vrot.lane.b32.xlu0 %v320, 104
    %v869 = vpop.permute.xlu0 %868
    %v870 = vsel %vm323, %v867, 0
    %v872 = vsel %vm323, %v869, 0
    %874 = vmatprep.subr.mxu0 0.0
    %875 = vmatpush1.xpose.msra.mxu0 0.0
    %876 = vmatprep.subr.mxu0 0.0
    %877 = vmatpush1.xpose.msra.mxu0 0.0
    %878 = vmatprep.subr.mxu0 0.0
    %879 = vmatpush1.xpose.msra.mxu0 0.0
    %880 = vmatprep.subr.mxu0 0.0
    %881 = vmatpush1.xpose.msra.mxu0 0.0
    %882 = vmatprep.subr.mxu0 0.0
    %883 = vmatpush1.xpose.msra.mxu0 0.0
    %884 = vmatprep.subr.mxu0 0.0
    %885 = vmatpush1.xpose.msra.mxu0 0.0
    %886 = vmatprep.subr.mxu0 0.0
    %887 = vmatpush1.xpose.msra.mxu0 0.0
    %888 = vmatprep.subr.mxu0 0.0
    %889 = vmatpush1.xpose.msra.mxu0 0.0
    %890 = vmatprep.subr.mxu0 0.0
    %891 = vmatpush1.xpose.msra.mxu0 0.0
    %892 = vmatprep.subr.mxu0 0.0
    %893 = vmatpush1.xpose.msra.mxu0 0.0
    %894 = vmatprep.subr.mxu0 0.0
    %895 = vmatpush1.xpose.msra.mxu0 0.0
    %896 = vmatprep.subr.mxu0 0.0
    %897 = vmatpush1.xpose.msra.mxu0 0.0
    %898 = vmatprep.subr.mxu0 0.0
    %899 = vmatpush1.xpose.msra.mxu0 0.0
    %900 = vmatprep.subr.mxu0 0.0
    %901 = vmatpush1.xpose.msra.mxu0 0.0
    %902 = vmatprep.subr.mxu0 0.0
    %903 = vmatpush1.xpose.msra.mxu0 0.0
    %904 = vmatprep.subr.mxu0 0.0
    %905 = vmatpush1.xpose.msra.mxu0 %v872
    %906 = vmatprep.subr.mxu0 0.0
    %907 = vmatpush2.xpose.msra.mxu0 0.0
    %908 = vmatprep.subr.mxu0 0.0
    %909 = vmatpush2.xpose.msra.mxu0 0.0
    %910 = vmatprep.subr.mxu0 0.0
    %911 = vmatpush2.xpose.msra.mxu0 0.0
    %912 = vmatprep.subr.mxu0 0.0
    %913 = vmatpush2.xpose.msra.mxu0 0.0
    %914 = vmatprep.subr.mxu0 0.0
    %915 = vmatpush2.xpose.msra.mxu0 0.0
    %916 = vmatprep.subr.mxu0 0.0
    %917 = vmatpush2.xpose.msra.mxu0 0.0
    %918 = vmatprep.subr.mxu0 0.0
    %919 = vmatpush2.xpose.msra.mxu0 0.0
    %920 = vmatprep.subr.mxu0 0.0
    %921 = vmatpush2.xpose.msra.mxu0 0.0
    %922 = vmatprep.subr.mxu0 0.0
    %923 = vmatpush2.xpose.msra.mxu0 0.0
    %924 = vmatprep.subr.mxu0 0.0
    %925 = vmatpush2.xpose.msra.mxu0 0.0
    %926 = vmatprep.subr.mxu0 0.0
    %927 = vmatpush2.xpose.msra.mxu0 0.0
    %928 = vmatprep.subr.mxu0 0.0
    %929 = vmatpush2.xpose.msra.mxu0 0.0
    %930 = vmatprep.subr.mxu0 0.0
    %931 = vmatpush2.xpose.msra.mxu0 0.0
    %932 = vmatprep.subr.mxu0 0.0
    %933 = vmatpush2.xpose.msra.mxu0 0.0
    %934 = vmatprep.subr.mxu0 0.0
    %935 = vmatpush2.xpose.msra.mxu0 0.0
    %936 = vmatprep.subr.mxu0 0.0
    %937 = vmatpush2.xpose.msra.mxu0 0.0
    %938 = vmatprep.mubr.f32.mxu0 0.0
    %939 = vmatmul.mubr.f32.gmra.mxu0 %v870
    %v940 = vpop.f32.mrf.mxu0
    %v941 = vadd.f32 0.0, %v940
    %v942 = vpop.f32.mrf.mxu0
    %943 = vdwg.mxu0
    %v944 = vsel %vm323, %v397, -inf
    %945 = vmax.xlane.f32.xlu0 %v944
    %v946 = vpop.xlane.xlu0 %945
    %v947 = vsel %vm323, %v475, -inf
    %948 = vmax.xlane.f32.xlu0 %v947
    %v949 = vpop.xlane.xlu0 %948
    %v950 = vsel %vm323, %v553, -inf
    %951 = vmax.xlane.f32.xlu0 %v950
    %v952 = vpop.xlane.xlu0 %951
    %v953 = vsel %vm323, %v631, -inf
    %954 = vmax.xlane.f32.xlu0 %v953
    %v955 = vpop.xlane.xlu0 %954
    %v956 = vsel %vm323, %v707, -inf
    %957 = vmax.xlane.f32.xlu0 %v956
    %v958 = vpop.xlane.xlu0 %957
    %v959 = vsel %vm323, %v785, -inf
    %960 = vmax.xlane.f32.xlu0 %v959
    %v961 = vpop.xlane.xlu0 %960
    %v962 = vsel %vm323, %v863, -inf
    %963 = vmax.xlane.f32.xlu0 %v962
    %v964 = vpop.xlane.xlu0 %963
    %v965 = vsel %vm323, %v941, -inf
    %966 = vmax.xlane.f32.xlu0 %v965
    %v967 = vpop.xlane.xlu0 %966
    %v968 = vsub.f32 %v397, %v946
    %v969 = vsub.f32 %v475, %v949
    %v970 = vsub.f32 %v553, %v952
    %v971 = vsub.f32 %v631, %v955
    %v972 = vsub.f32 %v707, %v958
    %v973 = vsub.f32 %v785, %v961
    %v974 = vsub.f32 %v863, %v964
    %v975 = vsub.f32 %v941, %v967
    %v976 = vmul.f32 %v968, 1.442695
    %v977 = vpow.pop %v976
    %v978 = vmul.f32 %v969, 1.442695
    %v979 = vpow.pop %v978
    %v980 = vmul.f32 %v970, 1.442695
    %v981 = vpow.pop %v980
    %v982 = vmul.f32 %v971, 1.442695
    %v983 = vpow.pop %v982
    %v984 = vmul.f32 %v972, 1.442695
    %v985 = vpow.pop %v984
    %v986 = vmul.f32 %v973, 1.442695
    %v987 = vpow.pop %v986
    %v988 = vmul.f32 %v974, 1.442695
    %v989 = vpow.pop %v988
    %v990 = vmul.f32 %v975, 1.442695
    %v991 = vpow.pop %v990
    %v992 = vsel %vm323, %v977, 0.0
    %993 = vadd.xlane.f32.xlu0 %v992
    %v994 = vpop.xlane.xlu0 %993
    %v995 = vsel %vm323, %v979, 0.0
    %996 = vadd.xlane.f32.xlu0 %v995
    %v997 = vpop.xlane.xlu0 %996
    %v998 = vsel %vm323, %v981, 0.0
    %999 = vadd.xlane.f32.xlu0 %v998
    %v1000 = vpop.xlane.xlu0 %999
    %v1001 = vsel %vm323, %v983, 0.0
    %1002 = vadd.xlane.f32.xlu0 %v1001
    %v1003 = vpop.xlane.xlu0 %1002
    %v1004 = vsel %vm323, %v985, 0.0
    %1005 = vadd.xlane.f32.xlu0 %v1004
    %v1006 = vpop.xlane.xlu0 %1005
    %v1007 = vsel %vm323, %v987, 0.0
    %1008 = vadd.xlane.f32.xlu0 %v1007
    %v1009 = vpop.xlane.xlu0 %1008
    %v1010 = vsel %vm323, %v989, 0.0
    %1011 = vadd.xlane.f32.xlu0 %v1010
    %v1012 = vpop.xlane.xlu0 %1011
    %v1013 = vsel %vm323, %v991, 0.0
    %1014 = vadd.xlane.f32.xlu0 %v1013
    %v1015 = vpop.xlane.xlu0 %1014
    %v1016 = vrcp.pop %v994
    %v1017 = vmul.f32 %v977, %v1016
    %v1018 = vrcp.pop %v997
    %v1019 = vmul.f32 %v979, %v1018
    %v1020 = vrcp.pop %v1000
    %v1021 = vmul.f32 %v981, %v1020
    %v1022 = vrcp.pop %v1003
    %v1023 = vmul.f32 %v983, %v1022
    %v1024 = vrcp.pop %v1006
    %v1025 = vmul.f32 %v985, %v1024
    %v1026 = vrcp.pop %v1009
    %v1027 = vmul.f32 %v987, %v1026
    %v1028 = vrcp.pop %v1012
    %v1029 = vmul.f32 %v989, %v1028
    %v1030 = vrcp.pop %v1015
    %v1031 = vmul.f32 %v991, %v1030
    %1032 = vrot.lane.b32.xlu0 %v315, 96
    %v1033 = vpop.permute.xlu0 %1032
    %v1036 = vsel %vm323, %v1017, 0
    %1038 = vmatprep.subr.mxu0 0.0
    %1039 = vmatpush1.msra.mxu0 0.0
    %1040 = vmatprep.subr.mxu0 0.0
    %1041 = vmatpush1.msra.mxu0 0.0
    %1042 = vmatprep.subr.mxu0 0.0
    %1043 = vmatpush1.msra.mxu0 0.0
    %1044 = vmatprep.subr.mxu0 0.0
    %1045 = vmatpush1.msra.mxu0 0.0
    %1046 = vmatprep.subr.mxu0 0.0
    %1047 = vmatpush1.msra.mxu0 0.0
    %1048 = vmatprep.subr.mxu0 0.0
    %1049 = vmatpush1.msra.mxu0 0.0
    %1050 = vmatprep.subr.mxu0 0.0
    %1051 = vmatpush1.msra.mxu0 0.0
    %1052 = vmatprep.subr.mxu0 0.0
    %1053 = vmatpush1.msra.mxu0 0.0
    %1054 = vmatprep.subr.mxu0 0.0
    %1055 = vmatpush1.msra.mxu0 0.0
    %1056 = vmatprep.subr.mxu0 0.0
    %1057 = vmatpush1.msra.mxu0 0.0
    %1058 = vmatprep.subr.mxu0 0.0
    %1059 = vmatpush1.msra.mxu0 0.0
    %1060 = vmatprep.subr.mxu0 0.0
    %1061 = vmatpush1.msra.mxu0 0.0
    %1062 = vmatprep.subr.mxu0 0.0
    %1063 = vmatpush1.msra.mxu0 0.0
    %1064 = vmatprep.subr.mxu0 0.0
    %1065 = vmatpush1.msra.mxu0 0.0
    %1066 = vmatprep.subr.mxu0 0.0
    %1067 = vmatpush1.msra.mxu0 0.0
    %1068 = vmatprep.subr.mxu0 0.0
    %1069 = vmatpush1.msra.mxu0 %v1033
    %1070 = vmatprep.subr.mxu0 0.0
    %1071 = vmatpush2.msra.mxu0 0.0
    %1072 = vmatprep.subr.mxu0 0.0
    %1073 = vmatpush2.msra.mxu0 0.0
    %1074 = vmatprep.subr.mxu0 0.0
    %1075 = vmatpush2.msra.mxu0 0.0
    %1076 = vmatprep.subr.mxu0 0.0
    %1077 = vmatpush2.msra.mxu0 0.0
    %1078 = vmatprep.subr.mxu0 0.0
    %1079 = vmatpush2.msra.mxu0 0.0
    %1080 = vmatprep.subr.mxu0 0.0
    %1081 = vmatpush2.msra.mxu0 0.0
    %1082 = vmatprep.subr.mxu0 0.0
    %1083 = vmatpush2.msra.mxu0 0.0
    %1084 = vmatprep.subr.mxu0 0.0
    %1085 = vmatpush2.msra.mxu0 0.0
    %1086 = vmatprep.subr.mxu0 0.0
    %1087 = vmatpush2.msra.mxu0 0.0
    %1088 = vmatprep.subr.mxu0 0.0
    %1089 = vmatpush2.msra.mxu0 0.0
    %1090 = vmatprep.subr.mxu0 0.0
    %1091 = vmatpush2.msra.mxu0 0.0
    %1092 = vmatprep.subr.mxu0 0.0
    %1093 = vmatpush2.msra.mxu0 0.0
    %1094 = vmatprep.subr.mxu0 0.0
    %1095 = vmatpush2.msra.mxu0 0.0
    %1096 = vmatprep.subr.mxu0 0.0
    %1097 = vmatpush2.msra.mxu0 0.0
    %1098 = vmatprep.subr.mxu0 0.0
    %1099 = vmatpush2.msra.mxu0 0.0
    %1100 = vmatprep.subr.mxu0 0.0
    %1101 = vmatpush2.msra.mxu0 0.0
    %1102 = vmatprep.mubr.f32.mxu0 0.0
    %1103 = vmatmul.mubr.f32.gmra.mxu0 %v1036
    %v1104 = vpop.f32.mrf.mxu0
    %v1105 = vadd.f32 0.0, %v1104
    %v1106 = vpop.f32.mrf.mxu0
    %1107 = vdwg.mxu0
    %1108 = vrot.lane.b32.xlu0 %v315, 88
    %v1109 = vpop.permute.xlu0 %1108
    %v1112 = vsel %vm323, %v1019, 0
    %1114 = vmatprep.subr.mxu0 0.0
    %1115 = vmatpush1.msra.mxu0 0.0
    %1116 = vmatprep.subr.mxu0 0.0
    %1117 = vmatpush1.msra.mxu0 0.0
    %1118 = vmatprep.subr.mxu0 0.0
    %1119 = vmatpush1.msra.mxu0 0.0
    %1120 = vmatprep.subr.mxu0 0.0
    %1121 = vmatpush1.msra.mxu0 0.0
    %1122 = vmatprep.subr.mxu0 0.0
    %1123 = vmatpush1.msra.mxu0 0.0
    %1124 = vmatprep.subr.mxu0 0.0
    %1125 = vmatpush1.msra.mxu0 0.0
    %1126 = vmatprep.subr.mxu0 0.0
    %1127 = vmatpush1.msra.mxu0 0.0
    %1128 = vmatprep.subr.mxu0 0.0
    %1129 = vmatpush1.msra.mxu0 0.0
    %1130 = vmatprep.subr.mxu0 0.0
    %1131 = vmatpush1.msra.mxu0 0.0
    %1132 = vmatprep.subr.mxu0 0.0
    %1133 = vmatpush1.msra.mxu0 0.0
    %1134 = vmatprep.subr.mxu0 0.0
    %1135 = vmatpush1.msra.mxu0 0.0
    %1136 = vmatprep.subr.mxu0 0.0
    %1137 = vmatpush1.msra.mxu0 0.0
    %1138 = vmatprep.subr.mxu0 0.0
    %1139 = vmatpush1.msra.mxu0 0.0
    %1140 = vmatprep.subr.mxu0 0.0
    %1141 = vmatpush1.msra.mxu0 0.0
    %1142 = vmatprep.subr.mxu0 0.0
    %1143 = vmatpush1.msra.mxu0 0.0
    %1144 = vmatprep.subr.mxu0 0.0
    %1145 = vmatpush1.msra.mxu0 %v1109
    %1146 = vmatprep.subr.mxu0 0.0
    %1147 = vmatpush2.msra.mxu0 0.0
    %1148 = vmatprep.subr.mxu0 0.0
    %1149 = vmatpush2.msra.mxu0 0.0
    %1150 = vmatprep.subr.mxu0 0.0
    %1151 = vmatpush2.msra.mxu0 0.0
    %1152 = vmatprep.subr.mxu0 0.0
    %1153 = vmatpush2.msra.mxu0 0.0
    %1154 = vmatprep.subr.mxu0 0.0
    %1155 = vmatpush2.msra.mxu0 0.0
    %1156 = vmatprep.subr.mxu0 0.0
    %1157 = vmatpush2.msra.mxu0 0.0
    %1158 = vmatprep.subr.mxu0 0.0
    %1159 = vmatpush2.msra.mxu0 0.0
    %1160 = vmatprep.subr.mxu0 0.0
    %1161 = vmatpush2.msra.mxu0 0.0
    %1162 = vmatprep.subr.mxu0 0.0
    %1163 = vmatpush2.msra.mxu0 0.0
    %1164 = vmatprep.subr.mxu0 0.0
    %1165 = vmatpush2.msra.mxu0 0.0
    %1166 = vmatprep.subr.mxu0 0.0
    %1167 = vmatpush2.msra.mxu0 0.0
    %1168 = vmatprep.subr.mxu0 0.0
    %1169 = vmatpush2.msra.mxu0 0.0
    %1170 = vmatprep.subr.mxu0 0.0
    %1171 = vmatpush2.msra.mxu0 0.0
    %1172 = vmatprep.subr.mxu0 0.0
    %1173 = vmatpush2.msra.mxu0 0.0
    %1174 = vmatprep.subr.mxu0 0.0
    %1175 = vmatpush2.msra.mxu0 0.0
    %1176 = vmatprep.subr.mxu0 0.0
    %1177 = vmatpush2.msra.mxu0 0.0
    %1178 = vmatprep.mubr.f32.mxu0 0.0
    %1179 = vmatmul.mubr.f32.gmra.mxu0 %v1112
    %v1180 = vpop.f32.mrf.mxu0
    %v1181 = vadd.f32 0.0, %v1180
    %v1182 = vpop.f32.mrf.mxu0
    %1183 = vdwg.mxu0
    %1184 = vrot.lane.b32.xlu0 %v315, 80
    %v1185 = vpop.permute.xlu0 %1184
    %v1188 = vsel %vm323, %v1021, 0
    %1190 = vmatprep.subr.mxu0 0.0
    %1191 = vmatpush1.msra.mxu0 0.0
    %1192 = vmatprep.subr.mxu0 0.0
    %1193 = vmatpush1.msra.mxu0 0.0
    %1194 = vmatprep.subr.mxu0 0.0
    %1195 = vmatpush1.msra.mxu0 0.0
    %1196 = vmatprep.subr.mxu0 0.0
    %1197 = vmatpush1.msra.mxu0 0.0
    %1198 = vmatprep.subr.mxu0 0.0
    %1199 = vmatpush1.msra.mxu0 0.0
    %1200 = vmatprep.subr.mxu0 0.0
    %1201 = vmatpush1.msra.mxu0 0.0
    %1202 = vmatprep.subr.mxu0 0.0
    %1203 = vmatpush1.msra.mxu0 0.0
    %1204 = vmatprep.subr.mxu0 0.0
    %1205 = vmatpush1.msra.mxu0 0.0
    %1206 = vmatprep.subr.mxu0 0.0
    %1207 = vmatpush1.msra.mxu0 0.0
    %1208 = vmatprep.subr.mxu0 0.0
    %1209 = vmatpush1.msra.mxu0 0.0
    %1210 = vmatprep.subr.mxu0 0.0
    %1211 = vmatpush1.msra.mxu0 0.0
    %1212 = vmatprep.subr.mxu0 0.0
    %1213 = vmatpush1.msra.mxu0 0.0
    %1214 = vmatprep.subr.mxu0 0.0
    %1215 = vmatpush1.msra.mxu0 0.0
    %1216 = vmatprep.subr.mxu0 0.0
    %1217 = vmatpush1.msra.mxu0 0.0
    %1218 = vmatprep.subr.mxu0 0.0
    %1219 = vmatpush1.msra.mxu0 0.0
    %1220 = vmatprep.subr.mxu0 0.0
    %1221 = vmatpush1.msra.mxu0 %v1185
    %1222 = vmatprep.subr.mxu0 0.0
    %1223 = vmatpush2.msra.mxu0 0.0
    %1224 = vmatprep.subr.mxu0 0.0
    %1225 = vmatpush2.msra.mxu0 0.0
    %1226 = vmatprep.subr.mxu0 0.0
    %1227 = vmatpush2.msra.mxu0 0.0
    %1228 = vmatprep.subr.mxu0 0.0
    %1229 = vmatpush2.msra.mxu0 0.0
    %1230 = vmatprep.subr.mxu0 0.0
    %1231 = vmatpush2.msra.mxu0 0.0
    %1232 = vmatprep.subr.mxu0 0.0
    %1233 = vmatpush2.msra.mxu0 0.0
    %1234 = vmatprep.subr.mxu0 0.0
    %1235 = vmatpush2.msra.mxu0 0.0
    %1236 = vmatprep.subr.mxu0 0.0
    %1237 = vmatpush2.msra.mxu0 0.0
    %1238 = vmatprep.subr.mxu0 0.0
    %1239 = vmatpush2.msra.mxu0 0.0
    %1240 = vmatprep.subr.mxu0 0.0
    %1241 = vmatpush2.msra.mxu0 0.0
    %1242 = vmatprep.subr.mxu0 0.0
    %1243 = vmatpush2.msra.mxu0 0.0
    %1244 = vmatprep.subr.mxu0 0.0
    %1245 = vmatpush2.msra.mxu0 0.0
    %1246 = vmatprep.subr.mxu0 0.0
    %1247 = vmatpush2.msra.mxu0 0.0
    %1248 = vmatprep.subr.mxu0 0.0
    %1249 = vmatpush2.msra.mxu0 0.0
    %1250 = vmatprep.subr.mxu0 0.0
    %1251 = vmatpush2.msra.mxu0 0.0
    %1252 = vmatprep.subr.mxu0 0.0
    %1253 = vmatpush2.msra.mxu0 0.0
    %1254 = vmatprep.mubr.f32.mxu0 0.0
    %1255 = vmatmul.mubr.f32.gmra.mxu0 %v1188
    %v1256 = vpop.f32.mrf.mxu0
    %v1257 = vadd.f32 0.0, %v1256
    %v1258 = vpop.f32.mrf.mxu0
    %1259 = vdwg.mxu0
    %1260 = vrot.lane.b32.xlu0 %v315, 72
    %v1261 = vpop.permute.xlu0 %1260
    %v1264 = vsel %vm323, %v1023, 0
    %1266 = vmatprep.subr.mxu0 0.0
    %1267 = vmatpush1.msra.mxu0 0.0
    %1268 = vmatprep.subr.mxu0 0.0
    %1269 = vmatpush1.msra.mxu0 0.0
    %1270 = vmatprep.subr.mxu0 0.0
    %1271 = vmatpush1.msra.mxu0 0.0
    %1272 = vmatprep.subr.mxu0 0.0
    %1273 = vmatpush1.msra.mxu0 0.0
    %1274 = vmatprep.subr.mxu0 0.0
    %1275 = vmatpush1.msra.mxu0 0.0
    %1276 = vmatprep.subr.mxu0 0.0
    %1277 = vmatpush1.msra.mxu0 0.0
    %1278 = vmatprep.subr.mxu0 0.0
    %1279 = vmatpush1.msra.mxu0 0.0
    %1280 = vmatprep.subr.mxu0 0.0
    %1281 = vmatpush1.msra.mxu0 0.0
    %1282 = vmatprep.subr.mxu0 0.0
    %1283 = vmatpush1.msra.mxu0 0.0
    %1284 = vmatprep.subr.mxu0 0.0
    %1285 = vmatpush1.msra.mxu0 0.0
    %1286 = vmatprep.subr.mxu0 0.0
    %1287 = vmatpush1.msra.mxu0 0.0
    %1288 = vmatprep.subr.mxu0 0.0
    %1289 = vmatpush1.msra.mxu0 0.0
    %1290 = vmatprep.subr.mxu0 0.0
    %1291 = vmatpush1.msra.mxu0 0.0
    %1292 = vmatprep.subr.mxu0 0.0
    %1293 = vmatpush1.msra.mxu0 0.0
    %1294 = vmatprep.subr.mxu0 0.0
    %1295 = vmatpush1.msra.mxu0 0.0
    %1296 = vmatprep.subr.mxu0 0.0
    %1297 = vmatpush1.msra.mxu0 %v1261
    %1298 = vmatprep.subr.mxu0 0.0
    %1299 = vmatpush2.msra.mxu0 0.0
    %1300 = vmatprep.subr.mxu0 0.0
    %1301 = vmatpush2.msra.mxu0 0.0
    %1302 = vmatprep.subr.mxu0 0.0
    %1303 = vmatpush2.msra.mxu0 0.0
    %1304 = vmatprep.subr.mxu0 0.0
    %1305 = vmatpush2.msra.mxu0 0.0
    %1306 = vmatprep.subr.mxu0 0.0
    %1307 = vmatpush2.msra.mxu0 0.0
    %1308 = vmatprep.subr.mxu0 0.0
    %1309 = vmatpush2.msra.mxu0 0.0
    %1310 = vmatprep.subr.mxu0 0.0
    %1311 = vmatpush2.msra.mxu0 0.0
    %1312 = vmatprep.subr.mxu0 0.0
    %1313 = vmatpush2.msra.mxu0 0.0
    %1314 = vmatprep.subr.mxu0 0.0
    %1315 = vmatpush2.msra.mxu0 0.0
    %1316 = vmatprep.subr.mxu0 0.0
    %1317 = vmatpush2.msra.mxu0 0.0
    %1318 = vmatprep.subr.mxu0 0.0
    %1319 = vmatpush2.msra.mxu0 0.0
    %1320 = vmatprep.subr.mxu0 0.0
    %1321 = vmatpush2.msra.mxu0 0.0
    %1322 = vmatprep.subr.mxu0 0.0
    %1323 = vmatpush2.msra.mxu0 0.0
    %1324 = vmatprep.subr.mxu0 0.0
    %1325 = vmatpush2.msra.mxu0 0.0
    %1326 = vmatprep.subr.mxu0 0.0
    %1327 = vmatpush2.msra.mxu0 0.0
    %1328 = vmatprep.subr.mxu0 0.0
    %1329 = vmatpush2.msra.mxu0 0.0
    %1330 = vmatprep.mubr.f32.mxu0 0.0
    %1331 = vmatmul.mubr.f32.gmra.mxu0 %v1264
    %v1332 = vpop.f32.mrf.mxu0
    %v1333 = vadd.f32 0.0, %v1332
    %v1334 = vpop.f32.mrf.mxu0
    %1335 = vdwg.mxu0
    %1337 = vrot.lane.b32.xlu0 %v1181, 8
    %v1338 = vpop.permute.xlu0 %1337
    %1341 = vrot.lane.b32.xlu0 %v1257, 16
    %v1342 = vpop.permute.xlu0 %1341
    %1345 = vrot.lane.b32.xlu0 %v1333, 24
    %v1346 = vpop.permute.xlu0 %1345
    %v1348 = vsel %vm323, %v1105, %v1338
    %vm1349 = vcmask 130048
    %v1350 = vsel %vm1349, %v1348, %v1342
    %vm1351 = vcmask 195584
    %v1352 = vsel %vm1351, %v1350, %v1346
    %1353 = vrot.lane.b32.xlu0 %v320, 96
    %v1354 = vpop.permute.xlu0 %1353
    %v1357 = vsel %vm323, %v1025, 0
    %1359 = vmatprep.subr.mxu0 0.0
    %1360 = vmatpush1.msra.mxu0 0.0
    %1361 = vmatprep.subr.mxu0 0.0
    %1362 = vmatpush1.msra.mxu0 0.0
    %1363 = vmatprep.subr.mxu0 0.0
    %1364 = vmatpush1.msra.mxu0 0.0
    %1365 = vmatprep.subr.mxu0 0.0
    %1366 = vmatpush1.msra.mxu0 0.0
    %1367 = vmatprep.subr.mxu0 0.0
    %1368 = vmatpush1.msra.mxu0 0.0
    %1369 = vmatprep.subr.mxu0 0.0
    %1370 = vmatpush1.msra.mxu0 0.0
    %1371 = vmatprep.subr.mxu0 0.0
    %1372 = vmatpush1.msra.mxu0 0.0
    %1373 = vmatprep.subr.mxu0 0.0
    %1374 = vmatpush1.msra.mxu0 0.0
    %1375 = vmatprep.subr.mxu0 0.0
    %1376 = vmatpush1.msra.mxu0 0.0
    %1377 = vmatprep.subr.mxu0 0.0
    %1378 = vmatpush1.msra.mxu0 0.0
    %1379 = vmatprep.subr.mxu0 0.0
    %1380 = vmatpush1.msra.mxu0 0.0
    %1381 = vmatprep.subr.mxu0 0.0
    %1382 = vmatpush1.msra.mxu0 0.0
    %1383 = vmatprep.subr.mxu0 0.0
    %1384 = vmatpush1.msra.mxu0 0.0
    %1385 = vmatprep.subr.mxu0 0.0
    %1386 = vmatpush1.msra.mxu0 0.0
    %1387 = vmatprep.subr.mxu0 0.0
    %1388 = vmatpush1.msra.mxu0 0.0
    %1389 = vmatprep.subr.mxu0 0.0
    %1390 = vmatpush1.msra.mxu0 %v1354
    %1391 = vmatprep.subr.mxu0 0.0
    %1392 = vmatpush2.msra.mxu0 0.0
    %1393 = vmatprep.subr.mxu0 0.0
    %1394 = vmatpush2.msra.mxu0 0.0
    %1395 = vmatprep.subr.mxu0 0.0
    %1396 = vmatpush2.msra.mxu0 0.0
    %1397 = vmatprep.subr.mxu0 0.0
    %1398 = vmatpush2.msra.mxu0 0.0
    %1399 = vmatprep.subr.mxu0 0.0
    %1400 = vmatpush2.msra.mxu0 0.0
    %1401 = vmatprep.subr.mxu0 0.0
    %1402 = vmatpush2.msra.mxu0 0.0
    %1403 = vmatprep.subr.mxu0 0.0
    %1404 = vmatpush2.msra.mxu0 0.0
    %1405 = vmatprep.subr.mxu0 0.0
    %1406 = vmatpush2.msra.mxu0 0.0
    %1407 = vmatprep.subr.mxu0 0.0
    %1408 = vmatpush2.msra.mxu0 0.0
    %1409 = vmatprep.subr.mxu0 0.0
    %1410 = vmatpush2.msra.mxu0 0.0
    %1411 = vmatprep.subr.mxu0 0.0
    %1412 = vmatpush2.msra.mxu0 0.0
    %1413 = vmatprep.subr.mxu0 0.0
    %1414 = vmatpush2.msra.mxu0 0.0
    %1415 = vmatprep.subr.mxu0 0.0
    %1416 = vmatpush2.msra.mxu0 0.0
    %1417 = vmatprep.subr.mxu0 0.0
    %1418 = vmatpush2.msra.mxu0 0.0
    %1419 = vmatprep.subr.mxu0 0.0
    %1420 = vmatpush2.msra.mxu0 0.0
    %1421 = vmatprep.subr.mxu0 0.0
    %1422 = vmatpush2.msra.mxu0 0.0
    %1423 = vmatprep.mubr.f32.mxu0 0.0
    %1424 = vmatmul.mubr.f32.gmra.mxu0 %v1357
    %v1425 = vpop.f32.mrf.mxu0
    %v1426 = vadd.f32 0.0, %v1425
    %v1427 = vpop.f32.mrf.mxu0
    %1428 = vdwg.mxu0
    %1429 = vrot.lane.b32.xlu0 %v320, 88
    %v1430 = vpop.permute.xlu0 %1429
    %v1433 = vsel %vm323, %v1027, 0
    %1435 = vmatprep.subr.mxu0 0.0
    %1436 = vmatpush1.msra.mxu0 0.0
    %1437 = vmatprep.subr.mxu0 0.0
    %1438 = vmatpush1.msra.mxu0 0.0
    %1439 = vmatprep.subr.mxu0 0.0
    %1440 = vmatpush1.msra.mxu0 0.0
    %1441 = vmatprep.subr.mxu0 0.0
    %1442 = vmatpush1.msra.mxu0 0.0
    %1443 = vmatprep.subr.mxu0 0.0
    %1444 = vmatpush1.msra.mxu0 0.0
    %1445 = vmatprep.subr.mxu0 0.0
    %1446 = vmatpush1.msra.mxu0 0.0
    %1447 = vmatprep.subr.mxu0 0.0
    %1448 = vmatpush1.msra.mxu0 0.0
    %1449 = vmatprep.subr.mxu0 0.0
    %1450 = vmatpush1.msra.mxu0 0.0
    %1451 = vmatprep.subr.mxu0 0.0
    %1452 = vmatpush1.msra.mxu0 0.0
    %1453 = vmatprep.subr.mxu0 0.0
    %1454 = vmatpush1.msra.mxu0 0.0
    %1455 = vmatprep.subr.mxu0 0.0
    %1456 = vmatpush1.msra.mxu0 0.0
    %1457 = vmatprep.subr.mxu0 0.0
    %1458 = vmatpush1.msra.mxu0 0.0
    %1459 = vmatprep.subr.mxu0 0.0
    %1460 = vmatpush1.msra.mxu0 0.0
    %1461 = vmatprep.subr.mxu0 0.0
    %1462 = vmatpush1.msra.mxu0 0.0
    %1463 = vmatprep.subr.mxu0 0.0
    %1464 = vmatpush1.msra.mxu0 0.0
    %1465 = vmatprep.subr.mxu0 0.0
    %1466 = vmatpush1.msra.mxu0 %v1430
    %1467 = vmatprep.subr.mxu0 0.0
    %1468 = vmatpush2.msra.mxu0 0.0
    %1469 = vmatprep.subr.mxu0 0.0
    %1470 = vmatpush2.msra.mxu0 0.0
    %1471 = vmatprep.subr.mxu0 0.0
    %1472 = vmatpush2.msra.mxu0 0.0
    %1473 = vmatprep.subr.mxu0 0.0
    %1474 = vmatpush2.msra.mxu0 0.0
    %1475 = vmatprep.subr.mxu0 0.0
    %1476 = vmatpush2.msra.mxu0 0.0
    %1477 = vmatprep.subr.mxu0 0.0
    %1478 = vmatpush2.msra.mxu0 0.0
    %1479 = vmatprep.subr.mxu0 0.0
    %1480 = vmatpush2.msra.mxu0 0.0
    %1481 = vmatprep.subr.mxu0 0.0
    %1482 = vmatpush2.msra.mxu0 0.0
    %1483 = vmatprep.subr.mxu0 0.0
    %1484 = vmatpush2.msra.mxu0 0.0
    %1485 = vmatprep.subr.mxu0 0.0
    %1486 = vmatpush2.msra.mxu0 0.0
    %1487 = vmatprep.subr.mxu0 0.0
    %1488 = vmatpush2.msra.mxu0 0.0
    %1489 = vmatprep.subr.mxu0 0.0
    %1490 = vmatpush2.msra.mxu0 0.0
    %1491 = vmatprep.subr.mxu0 0.0
    %1492 = vmatpush2.msra.mxu0 0.0
    %1493 = vmatprep.subr.mxu0 0.0
    %1494 = vmatpush2.msra.mxu0 0.0
    %1495 = vmatprep.subr.mxu0 0.0
    %1496 = vmatpush2.msra.mxu0 0.0
    %1497 = vmatprep.subr.mxu0 0.0
    %1498 = vmatpush2.msra.mxu0 0.0
    %1499 = vmatprep.mubr.f32.mxu0 0.0
    %1500 = vmatmul.mubr.f32.gmra.mxu0 %v1433
    %v1501 = vpop.f32.mrf.mxu0
    %v1502 = vadd.f32 0.0, %v1501
    %v1503 = vpop.f32.mrf.mxu0
    %1504 = vdwg.mxu0
    %1505 = vrot.lane.b32.xlu0 %v320, 80
    %v1506 = vpop.permute.xlu0 %1505
    %v1509 = vsel %vm323, %v1029, 0
    %1511 = vmatprep.subr.mxu0 0.0
    %1512 = vmatpush1.msra.mxu0 0.0
    %1513 = vmatprep.subr.mxu0 0.0
    %1514 = vmatpush1.msra.mxu0 0.0
    %1515 = vmatprep.subr.mxu0 0.0
    %1516 = vmatpush1.msra.mxu0 0.0
    %1517 = vmatprep.subr.mxu0 0.0
    %1518 = vmatpush1.msra.mxu0 0.0
    %1519 = vmatprep.subr.mxu0 0.0
    %1520 = vmatpush1.msra.mxu0 0.0
    %1521 = vmatprep.subr.mxu0 0.0
    %1522 = vmatpush1.msra.mxu0 0.0
    %1523 = vmatprep.subr.mxu0 0.0
    %1524 = vmatpush1.msra.mxu0 0.0
    %1525 = vmatprep.subr.mxu0 0.0
    %1526 = vmatpush1.msra.mxu0 0.0
    %1527 = vmatprep.subr.mxu0 0.0
    %1528 = vmatpush1.msra.mxu0 0.0
    %1529 = vmatprep.subr.mxu0 0.0
    %1530 = vmatpush1.msra.mxu0 0.0
    %1531 = vmatprep.subr.mxu0 0.0
    %1532 = vmatpush1.msra.mxu0 0.0
    %1533 = vmatprep.subr.mxu0 0.0
    %1534 = vmatpush1.msra.mxu0 0.0
    %1535 = vmatprep.subr.mxu0 0.0
    %1536 = vmatpush1.msra.mxu0 0.0
    %1537 = vmatprep.subr.mxu0 0.0
    %1538 = vmatpush1.msra.mxu0 0.0
    %1539 = vmatprep.subr.mxu0 0.0
    %1540 = vmatpush1.msra.mxu0 0.0
    %1541 = vmatprep.subr.mxu0 0.0
    %1542 = vmatpush1.msra.mxu0 %v1506
    %1543 = vmatprep.subr.mxu0 0.0
    %1544 = vmatpush2.msra.mxu0 0.0
    %1545 = vmatprep.subr.mxu0 0.0
    %1546 = vmatpush2.msra.mxu0 0.0
    %1547 = vmatprep.subr.mxu0 0.0
    %1548 = vmatpush2.msra.mxu0 0.0
    %1549 = vmatprep.subr.mxu0 0.0
    %1550 = vmatpush2.msra.mxu0 0.0
    %1551 = vmatprep.subr.mxu0 0.0
    %1552 = vmatpush2.msra.mxu0 0.0
    %1553 = vmatprep.subr.mxu0 0.0
    %1554 = vmatpush2.msra.mxu0 0.0
    %1555 = vmatprep.subr.mxu0 0.0
    %1556 = vmatpush2.msra.mxu0 0.0
    %1557 = vmatprep.subr.mxu0 0.0
    %1558 = vmatpush2.msra.mxu0 0.0
    %1559 = vmatprep.subr.mxu0 0.0
    %1560 = vmatpush2.msra.mxu0 0.0
    %1561 = vmatprep.subr.mxu0 0.0
    %1562 = vmatpush2.msra.mxu0 0.0
    %1563 = vmatprep.subr.mxu0 0.0
    %1564 = vmatpush2.msra.mxu0 0.0
    %1565 = vmatprep.subr.mxu0 0.0
    %1566 = vmatpush2.msra.mxu0 0.0
    %1567 = vmatprep.subr.mxu0 0.0
    %1568 = vmatpush2.msra.mxu0 0.0
    %1569 = vmatprep.subr.mxu0 0.0
    %1570 = vmatpush2.msra.mxu0 0.0
    %1571 = vmatprep.subr.mxu0 0.0
    %1572 = vmatpush2.msra.mxu0 0.0
    %1573 = vmatprep.subr.mxu0 0.0
    %1574 = vmatpush2.msra.mxu0 0.0
    %1575 = vmatprep.mubr.f32.mxu0 0.0
    %1576 = vmatmul.mubr.f32.gmra.mxu0 %v1509
    %v1577 = vpop.f32.mrf.mxu0
    %v1578 = vadd.f32 0.0, %v1577
    %v1579 = vpop.f32.mrf.mxu0
    %1580 = vdwg.mxu0
    %1581 = vrot.lane.b32.xlu0 %v320, 72
    %v1582 = vpop.permute.xlu0 %1581
    %v1585 = vsel %vm323, %v1031, 0
    %1587 = vmatprep.subr.mxu0 0.0
    %1588 = vmatpush1.msra.mxu0 0.0
    %1589 = vmatprep.subr.mxu0 0.0
    %1590 = vmatpush1.msra.mxu0 0.0
    %1591 = vmatprep.subr.mxu0 0.0
    %1592 = vmatpush1.msra.mxu0 0.0
    %1593 = vmatprep.subr.mxu0 0.0
    %1594 = vmatpush1.msra.mxu0 0.0
    %1595 = vmatprep.subr.mxu0 0.0
    %1596 = vmatpush1.msra.mxu0 0.0
    %1597 = vmatprep.subr.mxu0 0.0
    %1598 = vmatpush1.msra.mxu0 0.0
    %1599 = vmatprep.subr.mxu0 0.0
    %1600 = vmatpush1.msra.mxu0 0.0
    %1601 = vmatprep.subr.mxu0 0.0
    %1602 = vmatpush1.msra.mxu0 0.0
    %1603 = vmatprep.subr.mxu0 0.0
    %1604 = vmatpush1.msra.mxu0 0.0
    %1605 = vmatprep.subr.mxu0 0.0
    %1606 = vmatpush1.msra.mxu0 0.0
    %1607 = vmatprep.subr.mxu0 0.0
    %1608 = vmatpush1.msra.mxu0 0.0
    %1609 = vmatprep.subr.mxu0 0.0
    %1610 = vmatpush1.msra.mxu0 0.0
    %1611 = vmatprep.subr.mxu0 0.0
    %1612 = vmatpush1.msra.mxu0 0.0
    %1613 = vmatprep.subr.mxu0 0.0
    %1614 = vmatpush1.msra.mxu0 0.0
    %1615 = vmatprep.subr.mxu0 0.0
    %1616 = vmatpush1.msra.mxu0 0.0
    %1617 = vmatprep.subr.mxu0 0.0
    %1618 = vmatpush1.msra.mxu0 %v1582
    %1619 = vmatprep.subr.mxu0 0.0
    %1620 = vmatpush2.msra.mxu0 0.0
    %1621 = vmatprep.subr.mxu0 0.0
    %1622 = vmatpush2.msra.mxu0 0.0
    %1623 = vmatprep.subr.mxu0 0.0
    %1624 = vmatpush2.msra.mxu0 0.0
    %1625 = vmatprep.subr.mxu0 0.0
    %1626 = vmatpush2.msra.mxu0 0.0
    %1627 = vmatprep.subr.mxu0 0.0
    %1628 = vmatpush2.msra.mxu0 0.0
    %1629 = vmatprep.subr.mxu0 0.0
    %1630 = vmatpush2.msra.mxu0 0.0
    %1631 = vmatprep.subr.mxu0 0.0
    %1632 = vmatpush2.msra.mxu0 0.0
    %1633 = vmatprep.subr.mxu0 0.0
    %1634 = vmatpush2.msra.mxu0 0.0
    %1635 = vmatprep.subr.mxu0 0.0
    %1636 = vmatpush2.msra.mxu0 0.0
    %1637 = vmatprep.subr.mxu0 0.0
    %1638 = vmatpush2.msra.mxu0 0.0
    %1639 = vmatprep.subr.mxu0 0.0
    %1640 = vmatpush2.msra.mxu0 0.0
    %1641 = vmatprep.subr.mxu0 0.0
    %1642 = vmatpush2.msra.mxu0 0.0
    %1643 = vmatprep.subr.mxu0 0.0
    %1644 = vmatpush2.msra.mxu0 0.0
    %1645 = vmatprep.subr.mxu0 0.0
    %1646 = vmatpush2.msra.mxu0 0.0
    %1647 = vmatprep.subr.mxu0 0.0
    %1648 = vmatpush2.msra.mxu0 0.0
    %1649 = vmatprep.subr.mxu0 0.0
    %1650 = vmatpush2.msra.mxu0 0.0
    %1651 = vmatprep.mubr.f32.mxu0 0.0
    %1652 = vmatmul.mubr.f32.gmra.mxu0 %v1585
    %v1653 = vpop.f32.mrf.mxu0
    %v1654 = vadd.f32 0.0, %v1653
    %v1655 = vpop.f32.mrf.mxu0
    %1656 = vdwg.mxu0
    %1658 = vrot.lane.b32.xlu0 %v1502, 8
    %v1659 = vpop.permute.xlu0 %1658
    %1662 = vrot.lane.b32.xlu0 %v1578, 16
    %v1663 = vpop.permute.xlu0 %1662
    %1666 = vrot.lane.b32.xlu0 %v1654, 24
    %v1667 = vpop.permute.xlu0 %1666
    %v1669 = vsel %vm323, %v1426, %v1659
    %v1670 = vsel %vm1349, %v1669, %v1663
    %v1671 = vsel %vm1351, %v1670, %v1667
    %v1672 = vld [vmem:[#allocation10] sm:$0xff]
    %v1673 = vld [vmem:[#allocation10 + $0x8] sm:$0xff]
    %v1674 = vld [vmem:[#allocation10 + $0x10] sm:$0xff]
    %v1675 = vld [vmem:[#allocation10 + $0x18] sm:$0xff]
    %v1676 = vld [vmem:[%s7] sm:$0x1]
    %v1678 = vlaneseq
    %v1679 = vshrl.u32 %v1678, 7
    %v1680 = vsub.s32 0, %v1679
    %v1681 = vrot.slane %v1676, %v1680
    %v1684 = vsel %vm100, %v1352, 0
    %v1687 = vsel %vm100, %v1671, 0
    %1689 = vmatprep.subr.mxu0 0.0
    %1690 = vmatpush1.msra.mxu0 0.0
    %1691 = vmatprep.subr.mxu0 0.0
    %1692 = vmatpush1.msra.mxu0 0.0
    %1693 = vmatprep.subr.mxu0 0.0
    %1694 = vmatpush1.msra.mxu0 0.0
    %1695 = vmatprep.subr.mxu0 0.0
    %1696 = vmatpush1.msra.mxu0 0.0
    %1697 = vmatprep.subr.mxu0 0.0
    %1698 = vmatpush1.msra.mxu0 0.0
    %1699 = vmatprep.subr.mxu0 0.0
    %1700 = vmatpush1.msra.mxu0 0.0
    %1701 = vmatprep.subr.mxu0 0.0
    %1702 = vmatpush1.msra.mxu0 0.0
    %1703 = vmatprep.subr.mxu0 0.0
    %1704 = vmatpush1.msra.mxu0 0.0
    %1705 = vmatprep.subr.mxu0 0.0
    %1706 = vmatpush1.msra.mxu0 0.0
    %1707 = vmatprep.subr.mxu0 0.0
    %1708 = vmatpush1.msra.mxu0 0.0
    %1709 = vmatprep.subr.mxu0 0.0
    %1710 = vmatpush1.msra.mxu0 0.0
    %1711 = vmatprep.subr.mxu0 0.0
    %1712 = vmatpush1.msra.mxu0 0.0
    %1713 = vmatprep.subr.mxu0 0.0
    %1714 = vmatpush1.msra.mxu0 %v1675
    %1715 = vmatprep.subr.mxu0 0.0
    %1716 = vmatpush1.msra.mxu0 %v1674
    %1717 = vmatprep.subr.mxu0 0.0
    %1718 = vmatpush1.msra.mxu0 %v1673
    %1719 = vmatprep.subr.mxu0 0.0
    %1720 = vmatpush1.msra.mxu0 %v1672
    %1721 = vmatprep.subr.mxu0 0.0
    %1722 = vmatpush2.msra.mxu0 0.0
    %1723 = vmatprep.subr.mxu0 0.0
    %1724 = vmatpush2.msra.mxu0 0.0
    %1725 = vmatprep.subr.mxu0 0.0
    %1726 = vmatpush2.msra.mxu0 0.0
    %1727 = vmatprep.subr.mxu0 0.0
    %1728 = vmatpush2.msra.mxu0 0.0
    %1729 = vmatprep.subr.mxu0 0.0
    %1730 = vmatpush2.msra.mxu0 0.0
    %1731 = vmatprep.subr.mxu0 0.0
    %1732 = vmatpush2.msra.mxu0 0.0
    %1733 = vmatprep.subr.mxu0 0.0
    %1734 = vmatpush2.msra.mxu0 0.0
    %1735 = vmatprep.subr.mxu0 0.0
    %1736 = vmatpush2.msra.mxu0 0.0
    %1737 = vmatprep.subr.mxu0 0.0
    %1738 = vmatpush2.msra.mxu0 0.0
    %1739 = vmatprep.subr.mxu0 0.0
    %1740 = vmatpush2.msra.mxu0 0.0
    %1741 = vmatprep.subr.mxu0 0.0
    %1742 = vmatpush2.msra.mxu0 0.0
    %1743 = vmatprep.subr.mxu0 0.0
    %1744 = vmatpush2.msra.mxu0 0.0
    %1745 = vmatprep.subr.mxu0 0.0
    %1746 = vmatpush2.msra.mxu0 0.0
    %1747 = vmatprep.subr.mxu0 0.0
    %1748 = vmatpush2.msra.mxu0 0.0
    %1749 = vmatprep.subr.mxu0 0.0
    %1750 = vmatpush2.msra.mxu0 0.0
    %1751 = vmatprep.subr.mxu0 0.0
    %1752 = vmatpush2.msra.mxu0 0.0
    %1753 = vmatprep.mubr.f32.mxu0 0.0
    %1754 = vmatmul.mubr.f32.gmra.mxu0 %v1684
    %v1755 = vpop.f32.mrf.mxu0
    %v1756 = vadd.f32 %v1681, %v1755
    %v1757 = vpop.f32.mrf.mxu0
    %1758 = vmatprep.mubr.f32.mxu0 0.0
    %1759 = vmatmul.mubr.f32.gmra.mxu0 %v1687
    %v1760 = vpop.f32.mrf.mxu0
    %v1761 = vadd.f32 %v1681, %v1760
    %v1762 = vpop.f32.mrf.mxu0
    %1763 = vdwg.mxu0
    %1764 = vst.msk [vmem:[#allocation11] sm:$0xff] %vm100, %v1756
    %1765 = vst.msk [vmem:[#allocation11 + $0x8] sm:$0xff] %vm100, %v1761
    // Predicated region
    $region54: #{tpu_custom_call.1} parent=1 // pred_check
      _
    $region55: #{tpu_custom_call.1} parent=1 // pred_check_branch
      %1767 = sbr.rel (0) target = $region57
    $region56: #{tpu_custom_call.1} parent=1 // pred_region
      %s1769 = ssub.s32 256, 256
      %1770 = vsyncadd [#allocation4], %s1769
      %s1771 = sshll.u32 [#allocation11], 4
      %s1772 = int_to_ptr.vmem [resolvable:$true] %s1771
      %1777 = dma.vmem_to_hbm [thread:$0]  %s1772, 256, %s8, [#allocation4], 128, 128, 8
    $region57: #{tpu_custom_call.1} parent=1 // pred_fallthru
      _
    // Predicated region
    $region58: #{tpu_custom_call.1} parent=1 // pred_check
      _
    $region59: #{tpu_custom_call.1} parent=1 // pred_check_branch
      %1779 = sbr.rel (0) target = $region61
    $region60: #{tpu_custom_call.1} parent=1 // pred_region
      %1780 = dma.done [#allocation4], 256
    $region61: #{tpu_custom_call.1} parent=1 // pred_fallthru
      _
    %1781 = vsyncpa [#allocation3], 1
    %1782 = vsyncpa [#allocation6], 1
    %1783 = vsyncpa [#allocation9], 1
    %1784 = vsyncpa [#allocation4], 1

</llo_original>
